<compile_context>
chip_gen: v7x
topology: tpu7x:2x2x1
jax: 0.10.0
libtpu: 0.0.40
codegen_flags: <defaults>
</compile_context>

<pallas_src>
import functools

import jax
import jax.numpy as jnp
from jax.experimental import pallas as pl
from jax.experimental.pallas import tpu as pltpu

NEG_SLOPE = 0.01  # PyTorch nn.LeakyReLU default


def _leaky_relu(h):
    # Single VALU max instead of compare + select.
    return jnp.maximum(h, NEG_SLOPE * h)


def _round_up(n, m):
    return ((n + m - 1) // m) * m


def _discriminator_kernel(x_ref, w1_ref, b1_ref, w2_ref, b2_ref, w3_ref, b3_ref,
                          o_ref, *, approx_sigmoid):
    # fc1 (MXU, f32 accumulation) + LeakyReLU
    h = jnp.dot(x_ref[...], w1_ref[...], preferred_element_type=jnp.float32)
    h = _leaky_relu(h + b1_ref[...])
    # fc2 (MXU) + LeakyReLU
    h = jnp.dot(h.astype(w2_ref.dtype), w2_ref[...],
                preferred_element_type=jnp.float32)
    h = _leaky_relu(h + b2_ref[...])
    # fc3 has N=1: a 128x1 RHS wastes the MXU, so use a VPU multiply +
    # XLU lane reduction instead (w3 is stored as a [1, 128] row vector).
    h = jnp.sum(h * w3_ref[...].astype(jnp.float32), axis=-1, keepdims=True)
    h = _leaky_relu(h + b3_ref[...])
    # Sigmoid: exp on the EUP; approx reciprocal also EUP in the bf16 path.
    o_ref[...] = pl.reciprocal(1.0 + jnp.exp(-h), approx=approx_sigmoid)


def discriminator_forward(x, params, *, block_b=256, compute_dtype=jnp.float32):
    """Forward pass of the Discriminator MLP as one Pallas TPU kernel.

    x: [B, input_size] float32.
    params: dict with w1 [in, 256], b1 [1, 256], w2 [256, 128], b2 [1, 128],
            w3 [128, 1], b3 [1, 1]  (weights stored transposed: y = x @ W + b).
    """
    B, in_size = x.shape
    w1, b1 = params["w1"], params["b1"]
    w2, b2 = params["w2"], params["b2"]
    w3, b3 = params["w3"], params["b3"]
    h1, h2 = w1.shape[1], w2.shape[1]  # 256, 128

    use_bf16 = jnp.dtype(compute_dtype) == jnp.dtype(jnp.bfloat16)

    # --- Lane-align the fc1 reduction (K) dim: zero-pad to a multiple of 128.
    k_pad = _round_up(max(in_size, 128), 128)
    if k_pad != in_size:
        x = jnp.pad(x, ((0, 0), (0, k_pad - in_size)))
        w1 = jnp.pad(w1, ((0, k_pad - in_size), (0, 0)))

    # --- Batch tile (MXU M dim); zero-pad B up to a multiple of the tile.
    tb = block_b if B >= block_b else _round_up(B, 8)
    b_pad = _round_up(B, tb)
    if b_pad != B:
        x = jnp.pad(x, ((0, b_pad - B), (0, 0)))

    # --- Operand dtype: bf16 for bf16-native MXUs (v6e/v7x); biases stay f32.
    x = x.astype(compute_dtype)
    w1 = w1.astype(compute_dtype)
    w2 = w2.astype(compute_dtype)
    w3_row = w3.reshape(1, h2).astype(compute_dtype)  # [1, 128] row for the lane reduce
    b1 = b1.astype(jnp.float32)
    b2 = b2.astype(jnp.float32)
    b3 = b3.reshape(1, 1).astype(jnp.float32)

    grid = (b_pad // tb,)
    kernel = functools.partial(_discriminator_kernel, approx_sigmoid=use_bf16)

    itemsize = jnp.dtype(compute_dtype).itemsize
    flops = 2 * B * (in_size * h1 + h1 * h2 + h2)
    bytes_accessed = (
        b_pad * k_pad * itemsize                     # x
        + (k_pad * h1 + h1 * h2 + h2) * itemsize     # weights
        + (h1 + h2 + 1) * 4                          # biases
        + b_pad * 4                                  # output
    )

    out = pl.pallas_call(
        kernel,
        out_shape=jax.ShapeDtypeStruct((b_pad, 1), jnp.float32),
        grid=grid,
        in_specs=[
            pl.BlockSpec((tb, k_pad), lambda i: (i, 0)),   # x: tiled over batch
            pl.BlockSpec((k_pad, h1), lambda i: (0, 0)),   # w1: VMEM-resident
            pl.BlockSpec((1, h1), lambda i: (0, 0)),       # b1
            pl.BlockSpec((h1, h2), lambda i: (0, 0)),      # w2
            pl.BlockSpec((1, h2), lambda i: (0, 0)),       # b2
            pl.BlockSpec((1, h2), lambda i: (0, 0)),       # w3 (row)
            pl.BlockSpec((1, 1), lambda i: (0, 0)),        # b3
        ],
        out_specs=pl.BlockSpec((tb, 1), lambda i: (i, 0)),
        compiler_params=pltpu.CompilerParams(
            dimension_semantics=("parallel",)),
        cost_estimate=pl.CostEstimate(
            flops=flops, transcendentals=B, bytes_accessed=bytes_accessed),
    )(x, w1, b1, w2, b2, w3_row, b3)

    return out[:B]


def init_params(key, input_size):
    """Deterministic init matching nn.Linear shapes (stored transposed [in, out])."""
    k1, k2, k3, k4, k5, k6 = jax.random.split(key, 6)

    def lin(kw, kb, fan_in, fan_out):
        bound = 1.0 / jnp.sqrt(fan_in)
        w = jax.random.uniform(kw, (fan_in, fan_out), jnp.float32, -bound, bound)
        b = jax.random.uniform(kb, (1, fan_out), jnp.float32, -bound, bound)
        return w, b

    w1, b1 = lin(k1, k2, input_size, 256)
    w2, b2 = lin(k3, k4, 256, 128)
    w3, b3 = lin(k5, k6, 128, 1)
    return dict(w1=w1, b1=b1, w2=w2, b2=b2, w3=w3, b3=b3)


def reference_forward(x, params):
    def lrelu(h):
        return jnp.where(h > 0, h, NEG_SLOPE * h)
    h = lrelu(x @ params["w1"] + params["b1"])
    h = lrelu(h @ params["w2"] + params["b2"])
    h = lrelu(h @ params["w3"] + params["b3"])
    return jax.nn.sigmoid(h)


if __name__ == "__main__":
    key = jax.random.PRNGKey(0)
    kx, kp = jax.random.split(key)

    batch = 300        # not a multiple of the 256 batch tile -> exercises padding
    input_size = 32    # < 128 -> exercises K padding
    x = jax.random.normal(kx, (batch, input_size), jnp.float32)
    params = init_params(kp, input_size)

    ref = reference_forward(x, params)

    # f32-operand path (tight check against the plain-JAX reference).
    out_f32 = jax.block_until_ready(discriminator_forward(x, params))
    assert out_f32.shape == (batch, 1)
    assert jnp.allclose(out_f32, ref, atol=1e-4, rtol=1e-4), \
        float(jnp.max(jnp.abs(out_f32 - ref)))

    # bf16-operand path (MXU-native on v6e/v7x); f32 accumulation, looser tol.
    out_bf16 = jax.block_until_ready(
        discriminator_forward(x, params, compute_dtype=jnp.bfloat16))
    assert out_bf16.shape == (batch, 1)
    assert jnp.allclose(out_bf16, ref, atol=3e-2, rtol=3e-2), \
        float(jnp.max(jnp.abs(out_bf16 - ref)))

    print("KERNEL_OK")
</pallas_src>

<mosaic_0001>
module attributes {stable_mosaic.version = 11 : i64} {
  func.func @_discriminator_kernel(%arg0: i32, %arg1: memref<256x128xf32, #tpu.memory_space<vmem>>, %arg2: memref<128x256xf32, #tpu.memory_space<vmem>>, %arg3: memref<1x256xf32, #tpu.memory_space<vmem>>, %arg4: memref<256x128xf32, #tpu.memory_space<vmem>>, %arg5: memref<1x128xf32, #tpu.memory_space<vmem>>, %arg6: memref<1x128xf32, #tpu.memory_space<vmem>>, %arg7: memref<1x1xf32, #tpu.memory_space<vmem>>, %arg8: memref<256x1xf32, #tpu.memory_space<vmem>>) attributes {dimension_semantics = [#tpu.dimension_semantics<parallel>], iteration_bounds = array<i64: 2>, scalar_prefetch = 0 : i64, scratch_operands = 0 : i64, tpu.core_type = #tpu.core_type<tc>, window_params = [{transform_indices = @transform_0, window_bounds = array<i64: 256, 128>}, {pipeline_mode = #tpu.pipeline_mode<synchronous>, transform_indices = @transform_1, window_bounds = array<i64: 128, 256>}, {pipeline_mode = #tpu.pipeline_mode<synchronous>, transform_indices = @transform_2, window_bounds = array<i64: 1, 256>}, {pipeline_mode = #tpu.pipeline_mode<synchronous>, transform_indices = @transform_3, window_bounds = array<i64: 256, 128>}, {pipeline_mode = #tpu.pipeline_mode<synchronous>, transform_indices = @transform_4, window_bounds = array<i64: 1, 128>}, {pipeline_mode = #tpu.pipeline_mode<synchronous>, transform_indices = @transform_5, window_bounds = array<i64: 1, 128>}, {pipeline_mode = #tpu.pipeline_mode<synchronous>, transform_indices = @transform_6, window_bounds = array<i64: 1, 1>}, {transform_indices = @transform_7, window_bounds = array<i64: 256, 1>}]} {
    %c0 = arith.constant 0 : index
    %c0_0 = arith.constant 0 : index
    %0 = vector.load %arg1[%c0, %c0_0] : memref<256x128xf32, #tpu.memory_space<vmem>>, vector<256x128xf32>
    %c0_1 = arith.constant 0 : index
    %c0_2 = arith.constant 0 : index
    %1 = vector.load %arg2[%c0_1, %c0_2] : memref<128x256xf32, #tpu.memory_space<vmem>>, vector<128x256xf32>
    %cst = arith.constant dense<0.000000e+00> : vector<256x256xf32>
    %2 = tpu.matmul %0, %1, %cst {dimension_numbers = #tpu.dot_dimension_numbers<[1], [0], [0], [1], [0, 0, 1, 1], [], []>} : vector<256x128xf32>, vector<128x256xf32>, vector<256x256xf32> -> vector<256x256xf32>
    %c0_3 = arith.constant 0 : index
    %c0_4 = arith.constant 0 : index
    %3 = vector.load %arg3[%c0_3, %c0_4] : memref<1x256xf32, #tpu.memory_space<vmem>>, vector<1x256xf32>
    %4 = vector.broadcast %3 : vector<1x256xf32> to vector<256x256xf32>
    %5 = arith.addf %2, %4 : vector<256x256xf32>
    %cst_5 = arith.constant 0.00999999977 : f32
    %6 = vector.broadcast %cst_5 : f32 to vector<256x256xf32>
    %7 = arith.mulf %6, %5 : vector<256x256xf32>
    %8 = arith.maximumf %5, %7 : vector<256x256xf32>
    %c0_6 = arith.constant 0 : index
    %c0_7 = arith.constant 0 : index
    %9 = vector.load %arg4[%c0_6, %c0_7] : memref<256x128xf32, #tpu.memory_space<vmem>>, vector<256x128xf32>
    %cst_8 = arith.constant dense<0.000000e+00> : vector<256x128xf32>
    %10 = tpu.matmul %8, %9, %cst_8 {dimension_numbers = #tpu.dot_dimension_numbers<[1], [0], [0], [1], [0, 0, 1, 1], [], []>} : vector<256x256xf32>, vector<256x128xf32>, vector<256x128xf32> -> vector<256x128xf32>
    %c0_9 = arith.constant 0 : index
    %c0_10 = arith.constant 0 : index
    %11 = vector.load %arg5[%c0_9, %c0_10] : memref<1x128xf32, #tpu.memory_space<vmem>>, vector<1x128xf32>
    %12 = vector.broadcast %11 : vector<1x128xf32> to vector<256x128xf32>
    %13 = arith.addf %10, %12 : vector<256x128xf32>
    %cst_11 = arith.constant 0.00999999977 : f32
    %14 = vector.broadcast %cst_11 : f32 to vector<256x128xf32>
    %15 = arith.mulf %14, %13 : vector<256x128xf32>
    %16 = arith.maximumf %13, %15 : vector<256x128xf32>
    %c0_12 = arith.constant 0 : index
    %c0_13 = arith.constant 0 : index
    %17 = vector.load %arg6[%c0_12, %c0_13] : memref<1x128xf32, #tpu.memory_space<vmem>>, vector<1x128xf32>
    %18 = vector.broadcast %17 : vector<1x128xf32> to vector<256x128xf32>
    %19 = arith.mulf %16, %18 : vector<256x128xf32>
    %cst_14 = arith.constant dense<0.000000e+00> : vector<256xf32>
    %20 = vector.multi_reduction <add>, %19, %cst_14 [1] : vector<256x128xf32> to vector<256xf32>
    %21 = vector.shape_cast %20 : vector<256xf32> to vector<256x1xf32>
    %c0_15 = arith.constant 0 : index
    %c0_16 = arith.constant 0 : index
    %22 = vector.load %arg7[%c0_15, %c0_16] : memref<1x1xf32, #tpu.memory_space<vmem>>, vector<1x1xf32>
    %23 = vector.broadcast %22 : vector<1x1xf32> to vector<256x1xf32>
    %24 = arith.addf %21, %23 : vector<256x1xf32>
    %cst_17 = arith.constant 0.00999999977 : f32
    %25 = vector.broadcast %cst_17 : f32 to vector<256x1xf32>
    %26 = arith.mulf %25, %24 : vector<256x1xf32>
    %27 = arith.maximumf %24, %26 : vector<256x1xf32>
    %cst_18 = arith.constant 0.000000e+00 : f32
    %28 = vector.broadcast %cst_18 : f32 to vector<256x1xf32>
    %29 = arith.subf %28, %27 : vector<256x1xf32>
    %30 = math.exp %29 : vector<256x1xf32>
    %cst_19 = arith.constant 1.000000e+00 : f32
    %31 = vector.broadcast %cst_19 : f32 to vector<256x1xf32>
    %32 = arith.addf %31, %30 : vector<256x1xf32>
    %33 = tpu.reciprocal %32 : vector<256x1xf32> -> vector<256x1xf32>
    %c0_20 = arith.constant 0 : index
    %c0_21 = arith.constant 0 : index
    %34 = vector.load %arg8[%c0_20, %c0_21] : memref<256x1xf32, #tpu.memory_space<vmem>>, vector<256x1xf32>
    tpu.vector_store %arg8[%c0_20, %c0_21], %33 {strides = array<i32>} : memref<256x1xf32, #tpu.memory_space<vmem>>, vector<256x1xf32>,
    return
  }
  func.func @transform_0(%arg0: i32) -> (i32, i32) {
    %c0_i32 = arith.constant 0 : i32
    %c0_i32_0 = arith.constant 0 : i32
    return %arg0, %c0_i32 : i32, i32
  }
  func.func @transform_1(%arg0: i32) -> (i32, i32) {
    %c0_i32 = arith.constant 0 : i32
    %c0_i32_0 = arith.constant 0 : i32
    %c0_i32_1 = arith.constant 0 : i32
    return %c0_i32, %c0_i32_0 : i32, i32
  }
  func.func @transform_2(%arg0: i32) -> (i32, i32) {
    %c0_i32 = arith.constant 0 : i32
    %c0_i32_0 = arith.constant 0 : i32
    %c0_i32_1 = arith.constant 0 : i32
    return %c0_i32, %c0_i32_0 : i32, i32
  }
  func.func @transform_3(%arg0: i32) -> (i32, i32) {
    %c0_i32 = arith.constant 0 : i32
    %c0_i32_0 = arith.constant 0 : i32
    %c0_i32_1 = arith.constant 0 : i32
    return %c0_i32, %c0_i32_0 : i32, i32
  }
  func.func @transform_4(%arg0: i32) -> (i32, i32) {
    %c0_i32 = arith.constant 0 : i32
    %c0_i32_0 = arith.constant 0 : i32
    %c0_i32_1 = arith.constant 0 : i32
    return %c0_i32, %c0_i32_0 : i32, i32
  }
  func.func @transform_5(%arg0: i32) -> (i32, i32) {
    %c0_i32 = arith.constant 0 : i32
    %c0_i32_0 = arith.constant 0 : i32
    %c0_i32_1 = arith.constant 0 : i32
    return %c0_i32, %c0_i32_0 : i32, i32
  }
  func.func @transform_6(%arg0: i32) -> (i32, i32) {
    %c0_i32 = arith.constant 0 : i32
    %c0_i32_0 = arith.constant 0 : i32
    %c0_i32_1 = arith.constant 0 : i32
    return %c0_i32, %c0_i32_0 : i32, i32
  }
  func.func @transform_7(%arg0: i32) -> (i32, i32) {
    %c0_i32 = arith.constant 0 : i32
    %c0_i32_0 = arith.constant 0 : i32
    return %arg0, %c0_i32 : i32, i32
  }
}

</mosaic_0001>

<llo_original>
// kernel: tpu_custom_call.1
$region0: #{tpu_custom_call.1}
  #allocation0 [shape = 'u32[]', space=smem, size = 0x4, offset = 0x4, fixed_abs, tag = 'smem constant byte address 0x4 - core index']
  #allocation1 [shape = 'u32[144,128]{1,0:T(1,128)}', space=vmem, size = 0x12000, scoped, tag = 'internal scratch']
  #allocation2 [shape = 'f32[1,1]{1,0:T(1,128)S(1)}', space=vmem, size = 0x200, scoped, tag = 'scoped memory for tpu_custom_call.1']
  %s0 = inlined_call_operand.hbm [shape: f32[512,128], index: 0, kind: input, shape index: {}]
  %s1 = inlined_call_operand.hbm [shape: f32[128,256], index: 1, kind: input, shape index: {}]
  %s2 = inlined_call_operand.vmem [shape: f32[1,256], index: 2, kind: input, shape index: {}]
  %s3 = inlined_call_operand.hbm [shape: f32[256,128], index: 3, kind: input, shape index: {}]
  %s4 = inlined_call_operand.vmem [shape: f32[1,128], index: 4, kind: input, shape index: {}]
  %s5 = inlined_call_operand.vmem [shape: f32[1,128], index: 5, kind: input, shape index: {}]
  %s6 = inlined_call_operand.<no memory space> [shape: f32[1,1], index: 6, kind: input, shape index: {}]
  %s7 = inlined_call_operand.vmem [shape: f32[512,1], index: 7, kind: output, shape index: {}]
  %s8 = sld [smem:[#allocation0]]
  $region73: #{tpu_custom_call.1} parent=0
    _
  %s10 = ssub.s32 1, %s8
  %s11 = scalar_select 0, %s10, %s8
  %v12 = vstv %s6
  %13 = vst [vmem:[#allocation2] sm:$0x1] %v12
  $region1: #{tpu_custom_call.1} parent=0
    #allocation3 [shape = 'u8[262144]{0}', space=vmem, size = 0x40000, scoped, tag = 'input window, operand 0']
    #allocation4 [shape = 's32[2]{0}', space=sflag, size = 0x8, scoped, tag = 'scoped memory for tpu_custom_call.1']
    #allocation5 [shape = 'u8[131072]{0}', space=vmem, size = 0x20000, scoped, tag = 'input window, operand 1, single buffered']
    #allocation6 [shape = 's32[1]{0}', space=sflag, size = 0x4, scoped, tag = 'scoped memory for tpu_custom_call.1']
    #allocation7 [shape = 'u8[131072]{0}', space=vmem, size = 0x20000, scoped, tag = 'input window, operand 3, single buffered']
    %14 = vsyncpa [#allocation4], 0
    %s15 = scalar_lea.sflag [#allocation4], 1
    %16 = vsyncpa %s15, 0
    %17 = vsyncpa [#allocation6], 0
    loop: start=0, step=1, limit=4
    $region2: #{tpu_custom_call.1} parent=1 // loop_pre_header
      _
    $region3: #{tpu_custom_call.1} parent=1 // loop_header
      %s19 = sphi 0, %s23
      %p20 = scmp.ge.s32.totalorder %s19, 4
      %s29 = sphi 0, %s31
      %s32 = sphi 0, %s29
      %s33 = sphi 0, %s32
      %s49 = sphi 0, %s33
      %s53 = sphi 0, %s53
      %s55 = sphi 0, %s53
      %s56 = sphi 0, %s55
      %s70 = sphi 0, %s56
      %s74 = sphi 0, %s74
      %s76 = sphi 0, %s74
      %s77 = sphi 0, %s76
      %s91 = sphi 0, %s77
      %s95 = sphi 0, %s95
      %s97 = sphi 0, %s95
      %s98 = sphi 0, %s97
      %s112 = sphi 0, %s98
      %s116 = sphi 0, %s116
      %s118 = sphi 0, %s116
      %s119 = sphi 0, %s118
      %s133 = sphi 0, %s119
      %s137 = sphi 0, %s137
      %s139 = sphi 0, %s137
      %s140 = sphi 0, %s139
      %s154 = sphi 0, %s140
      %s158 = sphi 0, %s158
      %s160 = sphi 0, %s158
      %s161 = sphi 0, %s160
      %s175 = sphi 0, %s161
      %s181 = sphi 0, %s183
      %s184 = sphi 0, %s181
      %s185 = sphi 0, %s184
      %s201 = sphi 0, %s185
    $region4: #{tpu_custom_call.1} parent=1 // loop_header_branch
      %22 = sbr.rel (%p20) target = $region8
    $region5: #{tpu_custom_call.1} parent=1 // loop_body
      %s24 = ssub.s32 %s19, 1
      %s25 = ssub.s32 %s19, 2
      %s26 = sadd.s32 %s19, 1
      %s27 = ssub.s32 %s19, %s26
      %p28 = scmp.eq.s32.totalorder %s27, 0
      %s30 = sadd.s32 %s29, 1
      %s31 = scalar_select %p28, %s29, %s30
      %p34 = pneg %p28
      %p35 = scmp.eq.s32.totalorder %s19, 1
      %p36 = por %p34, %p35
      %p37 = scmp.ne.s32.totalorder %s29, %s32
      %p38 = scmp.eq.s32.totalorder %s19, 0
      %p39 = por %p37, %p38
      %p40 = scmp.ne.s32.totalorder %s29, %s32
      %p41 = scmp.eq.s32.totalorder %s24, 1
      %p42 = por %p40, %p41
      %p43 = scmp.ne.s32.totalorder %s32, %s33
      %p44 = scmp.eq.s32.totalorder %s24, 0
      %p45 = por %p43, %p44
      %p46 = scmp.ne.s32.totalorder %s32, %s33
      %p47 = scmp.eq.s32.totalorder %s25, 1
      %p48 = por %p46, %p47
      %p50 = scmp.ne.s32.totalorder %s33, %s49
      %p51 = scmp.eq.s32.totalorder %s25, 0
      %p52 = por %p50, %p51
      %s54 = sadd.s32 %s53, 1
      %p57 = scmp.eq.s32.totalorder %s19, 1
      %p58 = scmp.ne.s32.totalorder %s53, %s55
      %p59 = scmp.eq.s32.totalorder %s19, 0
      %p60 = por %p58, %p59
      %p61 = scmp.ne.s32.totalorder %s53, %s55
      %p62 = scmp.eq.s32.totalorder %s24, 1
      %p63 = por %p61, %p62
      %p64 = scmp.ne.s32.totalorder %s55, %s56
      %p65 = scmp.eq.s32.totalorder %s24, 0
      %p66 = por %p64, %p65
      %p67 = scmp.ne.s32.totalorder %s55, %s56
      %p68 = scmp.eq.s32.totalorder %s25, 1
      %p69 = por %p67, %p68
      %p71 = scmp.ne.s32.totalorder %s56, %s70
      %p72 = scmp.eq.s32.totalorder %s25, 0
      %p73 = por %p71, %p72
      %s75 = sadd.s32 %s74, 1
      %p78 = scmp.eq.s32.totalorder %s19, 1
      %p79 = scmp.ne.s32.totalorder %s74, %s76
      %p80 = scmp.eq.s32.totalorder %s19, 0
      %p81 = por %p79, %p80
      %p82 = scmp.ne.s32.totalorder %s74, %s76
      %p83 = scmp.eq.s32.totalorder %s24, 1
      %p84 = por %p82, %p83
      %p85 = scmp.ne.s32.totalorder %s76, %s77
      %p86 = scmp.eq.s32.totalorder %s24, 0
      %p87 = por %p85, %p86
      %p88 = scmp.ne.s32.totalorder %s76, %s77
      %p89 = scmp.eq.s32.totalorder %s25, 1
      %p90 = por %p88, %p89
      %p92 = scmp.ne.s32.totalorder %s77, %s91
      %p93 = scmp.eq.s32.totalorder %s25, 0
      %p94 = por %p92, %p93
      %s96 = sadd.s32 %s95, 1
      %p99 = scmp.eq.s32.totalorder %s19, 1
      %p100 = scmp.ne.s32.totalorder %s95, %s97
      %p101 = scmp.eq.s32.totalorder %s19, 0
      %p102 = por %p100, %p101
      %p103 = scmp.ne.s32.totalorder %s95, %s97
      %p104 = scmp.eq.s32.totalorder %s24, 1
      %p105 = por %p103, %p104
      %p106 = scmp.ne.s32.totalorder %s97, %s98
      %p107 = scmp.eq.s32.totalorder %s24, 0
      %p108 = por %p106, %p107
      %p109 = scmp.ne.s32.totalorder %s97, %s98
      %p110 = scmp.eq.s32.totalorder %s25, 1
      %p111 = por %p109, %p110
      %p113 = scmp.ne.s32.totalorder %s98, %s112
      %p114 = scmp.eq.s32.totalorder %s25, 0
      %p115 = por %p113, %p114
      %s117 = sadd.s32 %s116, 1
      %p120 = scmp.eq.s32.totalorder %s19, 1
      %p121 = scmp.ne.s32.totalorder %s116, %s118
      %p122 = scmp.eq.s32.totalorder %s19, 0
      %p123 = por %p121, %p122
      %p124 = scmp.ne.s32.totalorder %s116, %s118
      %p125 = scmp.eq.s32.totalorder %s24, 1
      %p126 = por %p124, %p125
      %p127 = scmp.ne.s32.totalorder %s118, %s119
      %p128 = scmp.eq.s32.totalorder %s24, 0
      %p129 = por %p127, %p128
      %p130 = scmp.ne.s32.totalorder %s118, %s119
      %p131 = scmp.eq.s32.totalorder %s25, 1
      %p132 = por %p130, %p131
      %p134 = scmp.ne.s32.totalorder %s119, %s133
      %p135 = scmp.eq.s32.totalorder %s25, 0
      %p136 = por %p134, %p135
      %s138 = sadd.s32 %s137, 1
      %p141 = scmp.eq.s32.totalorder %s19, 1
      %p142 = scmp.ne.s32.totalorder %s137, %s139
      %p143 = scmp.eq.s32.totalorder %s19, 0
      %p144 = por %p142, %p143
      %p145 = scmp.ne.s32.totalorder %s137, %s139
      %p146 = scmp.eq.s32.totalorder %s24, 1
      %p147 = por %p145, %p146
      %p148 = scmp.ne.s32.totalorder %s139, %s140
      %p149 = scmp.eq.s32.totalorder %s24, 0
      %p150 = por %p148, %p149
      %p151 = scmp.ne.s32.totalorder %s139, %s140
      %p152 = scmp.eq.s32.totalorder %s25, 1
      %p153 = por %p151, %p152
      %p155 = scmp.ne.s32.totalorder %s140, %s154
      %p156 = scmp.eq.s32.totalorder %s25, 0
      %p157 = por %p155, %p156
      %s159 = sadd.s32 %s158, 1
      %p162 = scmp.eq.s32.totalorder %s19, 1
      %p163 = scmp.ne.s32.totalorder %s158, %s160
      %p164 = scmp.eq.s32.totalorder %s19, 0
      %p165 = por %p163, %p164
      %p166 = scmp.ne.s32.totalorder %s158, %s160
      %p167 = scmp.eq.s32.totalorder %s24, 1
      %p168 = por %p166, %p167
      %p169 = scmp.ne.s32.totalorder %s160, %s161
      %p170 = scmp.eq.s32.totalorder %s24, 0
      %p171 = por %p169, %p170
      %p172 = scmp.ne.s32.totalorder %s160, %s161
      %p173 = scmp.eq.s32.totalorder %s25, 1
      %p174 = por %p172, %p173
      %p176 = scmp.ne.s32.totalorder %s161, %s175
      %p177 = scmp.eq.s32.totalorder %s25, 0
      %p178 = por %p176, %p177
      %s179 = ssub.s32 %s19, %s26
      %p180 = scmp.eq.s32.totalorder %s179, 0
      %s182 = sadd.s32 %s181, 1
      %s183 = scalar_select %p180, %s181, %s182
      %p186 = pneg %p180
      %p187 = scmp.eq.s32.totalorder %s19, 1
      %p188 = por %p186, %p187
      %p189 = scmp.ne.s32.totalorder %s181, %s184
      %p190 = scmp.eq.s32.totalorder %s19, 0
      %p191 = por %p189, %p190
      %p192 = scmp.ne.s32.totalorder %s181, %s184
      %p193 = scmp.eq.s32.totalorder %s24, 1
      %p194 = por %p192, %p193
      %p195 = scmp.ne.s32.totalorder %s184, %s185
      %p196 = scmp.eq.s32.totalorder %s24, 0
      %p197 = por %p195, %p196
      %p198 = scmp.ne.s32.totalorder %s184, %s185
      %p199 = scmp.eq.s32.totalorder %s25, 1
      %p200 = por %p198, %p199
      %p202 = scmp.ne.s32.totalorder %s185, %s201
      %p203 = scmp.eq.s32.totalorder %s25, 0
      %p204 = por %p202, %p203
      %p205 = scmp.le.s32.totalorder 1, %s19
      %p206 = scmp.lt.s32.totalorder %s19, 3
      %p207 = pnand %p205, %p206
      %p208 = pneg %p207
      // Predicated region
      $region9: #{tpu_custom_call.1} parent=5 // pred_check
        _
      $region10: #{tpu_custom_call.1} parent=5 // pred_check_branch
        %210 = sbr.rel (%p207) target = $region12
      $region11: #{tpu_custom_call.1} parent=5 // pred_region
        %s211 = ssub.s32 %s19, 1
        // Predicated region
        $region13: #{tpu_custom_call.1} parent=11 // pred_check
          %p212 = pneg %p66
        $region14: #{tpu_custom_call.1} parent=11 // pred_check_branch
          %214 = sbr.rel (%p212) target = $region16
        $region15: #{tpu_custom_call.1} parent=11 // pred_region
          %s216 = ssub.s32 4096, 4096
          %217 = vsyncadd [#allocation6], %s216
          %s218 = sshll.u32 [#allocation5], 4
          %s219 = int_to_ptr.vmem [resolvable:$true] %s218
          %224 = dma.hbm_to_vmem [thread:$0]  %s1, 4096, %s219, [#allocation6], 256, 256, 16
        $region16: #{tpu_custom_call.1} parent=11 // pred_fallthru
          _
        // Predicated region
        $region17: #{tpu_custom_call.1} parent=11 // pred_check
          %p225 = pneg %p87
        $region18: #{tpu_custom_call.1} parent=11 // pred_check_branch
          %227 = sbr.rel (%p225) target = $region20
        $region19: #{tpu_custom_call.1} parent=11 // pred_region
          _
        $region20: #{tpu_custom_call.1} parent=11 // pred_fallthru
          _
        // Predicated region
        $region21: #{tpu_custom_call.1} parent=11 // pred_check
          %p228 = pneg %p108
        $region22: #{tpu_custom_call.1} parent=11 // pred_check_branch
          %230 = sbr.rel (%p228) target = $region24
        $region23: #{tpu_custom_call.1} parent=11 // pred_region
          %s232 = ssub.s32 4096, 4096
          %233 = vsyncadd [#allocation6], %s232
          %s234 = sshll.u32 [#allocation7], 4
          %s235 = int_to_ptr.vmem [resolvable:$true] %s234
          %240 = dma.hbm_to_vmem [thread:$0]  %s3, 4096, %s235, [#allocation6], 128, 128, 8
        $region24: #{tpu_custom_call.1} parent=11 // pred_fallthru
          _
        // Predicated region
        $region25: #{tpu_custom_call.1} parent=11 // pred_check
          %p241 = pneg %p129
        $region26: #{tpu_custom_call.1} parent=11 // pred_check_branch
          %243 = sbr.rel (%p241) target = $region28
        $region27: #{tpu_custom_call.1} parent=11 // pred_region
          _
        $region28: #{tpu_custom_call.1} parent=11 // pred_fallthru
          _
        // Predicated region
        $region29: #{tpu_custom_call.1} parent=11 // pred_check
          %p244 = pneg %p150
        $region30: #{tpu_custom_call.1} parent=11 // pred_check_branch
          %246 = sbr.rel (%p244) target = $region32
        $region31: #{tpu_custom_call.1} parent=11 // pred_region
          _
        $region32: #{tpu_custom_call.1} parent=11 // pred_fallthru
          _
        // Predicated region
        $region33: #{tpu_custom_call.1} parent=11 // pred_check
          %p247 = pneg %p171
        $region34: #{tpu_custom_call.1} parent=11 // pred_check_branch
          %249 = sbr.rel (%p247) target = $region36
        $region35: #{tpu_custom_call.1} parent=11 // pred_region
          _
        $region36: #{tpu_custom_call.1} parent=11 // pred_fallthru
          _
      $region12: #{tpu_custom_call.1} parent=5 // pred_fallthru
        _
      %p250 = scmp.lt.s32.totalorder %s19, 2
      // Predicated region
      $region37: #{tpu_custom_call.1} parent=5 // pred_check
        %p251 = pneg %p250
      $region38: #{tpu_custom_call.1} parent=5 // pred_check_branch
        %253 = sbr.rel (%p251) target = $region40
      $region39: #{tpu_custom_call.1} parent=5 // pred_region
        // Predicated region
        $region41: #{tpu_custom_call.1} parent=39 // pred_check
          %p254 = pneg %p39
        $region42: #{tpu_custom_call.1} parent=39 // pred_check_branch
          %256 = sbr.rel (%p254) target = $region44
        $region43: #{tpu_custom_call.1} parent=39 // pred_region
          %s257 = sand.u32 %s29, 1
          %s258 = scalar_lea.sflag [#allocation4], %s257
          %s259 = sand.u32 %s29, 1
          %s260 = smul.addr %s259, 256
          %s261 = scalar_lea.vmem [#allocation3], %s260
          %s262 = smul.u32 32, %s19
          %s264 = ssub.s32 4096, 4096
          %265 = vsyncadd %s258, %s264
          %s266 = smul.addr %s262, 128
          %s267 = scalar_lea.hbm %s0, %s266
          %s268 = sshll.u32 %s261, 4
          %s269 = int_to_ptr.vmem [resolvable:$true] %s268
          %274 = dma.hbm_to_vmem [thread:$0]  %s267, 4096, %s269, %s258, 128, 128, 8
        $region44: #{tpu_custom_call.1} parent=39 // pred_fallthru
          _
      $region40: #{tpu_custom_call.1} parent=5 // pred_fallthru
        _
      %p275 = scmp.le.s32.totalorder 1, %s19
      %p276 = scmp.lt.s32.totalorder %s19, 3
      %p277 = pnand %p275, %p276
      %p278 = pneg %p277
      // Predicated region
      $region45: #{tpu_custom_call.1} parent=5 // pred_check
        _
      $region46: #{tpu_custom_call.1} parent=5 // pred_check_branch
        %280 = sbr.rel (%p277) target = $region48
      $region47: #{tpu_custom_call.1} parent=5 // pred_region
        %s281 = ssub.s32 %s19, 1
        %s282 = sand.u32 %s32, 1
        %s283 = scalar_lea.sflag [#allocation4], %s282
        %s284 = sand.u32 %s32, 1
        %s285 = smul.addr %s284, 256
        %s286 = scalar_lea.vmem [#allocation3], %s285
        // Predicated region
        $region49: #{tpu_custom_call.1} parent=47 // pred_check
          %p287 = pneg %p45
        $region50: #{tpu_custom_call.1} parent=47 // pred_check_branch
          %289 = sbr.rel (%p287) target = $region52
        $region51: #{tpu_custom_call.1} parent=47 // pred_region
          %290 = dma.done %s283, 4096
        $region52: #{tpu_custom_call.1} parent=47 // pred_fallthru
          _
        // Predicated region
        $region53: #{tpu_custom_call.1} parent=47 // pred_check
          %p291 = pneg %p66
        $region54: #{tpu_custom_call.1} parent=47 // pred_check_branch
          %293 = sbr.rel (%p291) target = $region56
        $region55: #{tpu_custom_call.1} parent=47 // pred_region
          %294 = dma.done [#allocation6], 4096
        $region56: #{tpu_custom_call.1} parent=47 // pred_fallthru
          _
        // Predicated region
        $region57: #{tpu_custom_call.1} parent=47 // pred_check
          %p295 = pneg %p108
        $region58: #{tpu_custom_call.1} parent=47 // pred_check_branch
          %297 = sbr.rel (%p295) target = $region60
        $region59: #{tpu_custom_call.1} parent=47 // pred_region
          %298 = dma.done [#allocation6], 4096
        $region60: #{tpu_custom_call.1} parent=47 // pred_fallthru
          _
        %s299 = sand.u32 %s32, 1
        %s300 = scalar_lea.sflag [#allocation4], %s299
        %s301 = sand.u32 %s32, 1
        %s302 = smul.addr %s301, 256
        %s303 = scalar_lea.vmem [#allocation3], %s302
        %p304 = pneg %p45
        %p305 = pneg %p42
        %p306 = pneg %p66
        %p307 = pneg %p63
        %p308 = pneg %p87
        %p309 = pneg %p84
        %p310 = pneg %p108
        %p311 = pneg %p105
        %p312 = pneg %p129
        %p313 = pneg %p126
        %p314 = pneg %p150
        %p315 = pneg %p147
        %p316 = pneg %p171
        %p317 = pneg %p168
        %p318 = pneg %p197
        %p319 = pneg %p194
        %s320 = smul.u32 32, %s24
        %p321 = scmp.lt.s32.totalorder %s320, 63
        %s322 = scalar_select %p321, %s320, 63
        %s323 = smul.addr %s322, 8
        %s324 = scalar_lea.vmem %s7, %s323
        %s325 = smul.u32 32, %s24
        %s326 = smul.u32 32, %s24
        %p327 = scmp.lt.s32.totalorder %s326, 63
        %s328 = scalar_select %p327, %s326, 63
        %s329 = smul.addr %s328, 8
        %s330 = scalar_lea.vmem %s7, %s329
        %s331 = smul.u32 32, %s24
        %v332 = vld [vmem:[%s286] sm:$0xff]
        %v333 = vld [vmem:[%s286 + $0x8] sm:$0xff]
        %v334 = vld [vmem:[%s286 + $0x10] sm:$0xff]
        %v335 = vld [vmem:[%s286 + $0x18] sm:$0xff]
        %v336 = vld [vmem:[%s286 + $0x20] sm:$0xff]
        %v337 = vld [vmem:[%s286 + $0x28] sm:$0xff]
        %v338 = vld [vmem:[%s286 + $0x30] sm:$0xff]
        %v339 = vld [vmem:[%s286 + $0x38] sm:$0xff]
        %v340 = vld [vmem:[%s286 + $0x40] sm:$0xff]
        %v341 = vld [vmem:[%s286 + $0x48] sm:$0xff]
        %v342 = vld [vmem:[%s286 + $0x50] sm:$0xff]
        %v343 = vld [vmem:[%s286 + $0x58] sm:$0xff]
        %v344 = vld [vmem:[%s286 + $0x60] sm:$0xff]
        %v345 = vld [vmem:[%s286 + $0x68] sm:$0xff]
        %v346 = vld [vmem:[%s286 + $0x70] sm:$0xff]
        %v347 = vld [vmem:[%s286 + $0x78] sm:$0xff]
        %v348 = vld [vmem:[%s286 + $0x80] sm:$0xff]
        %v349 = vld [vmem:[%s286 + $0x88] sm:$0xff]
        %v350 = vld [vmem:[%s286 + $0x90] sm:$0xff]
        %v351 = vld [vmem:[%s286 + $0x98] sm:$0xff]
        %v352 = vld [vmem:[%s286 + $0xa0] sm:$0xff]
        %v353 = vld [vmem:[%s286 + $0xa8] sm:$0xff]
        %v354 = vld [vmem:[%s286 + $0xb0] sm:$0xff]
        %v355 = vld [vmem:[%s286 + $0xb8] sm:$0xff]
        %v356 = vld [vmem:[%s286 + $0xc0] sm:$0xff]
        %v357 = vld [vmem:[%s286 + $0xc8] sm:$0xff]
        %v358 = vld [vmem:[%s286 + $0xd0] sm:$0xff]
        %v359 = vld [vmem:[%s286 + $0xd8] sm:$0xff]
        %v360 = vld [vmem:[%s286 + $0xe0] sm:$0xff]
        %v361 = vld [vmem:[%s286 + $0xe8] sm:$0xff]
        %v362 = vld [vmem:[%s286 + $0xf0] sm:$0xff]
        %v363 = vld [vmem:[%s286 + $0xf8] sm:$0xff]
        %v364 = vld [vmem:[#allocation5] sm:$0xff]
        %v365 = vld [vmem:[#allocation5 + $0x8] sm:$0xff]
        %v366 = vld [vmem:[#allocation5 + $0x10] sm:$0xff]
        %v367 = vld [vmem:[#allocation5 + $0x18] sm:$0xff]
        %v368 = vld [vmem:[#allocation5 + $0x20] sm:$0xff]
        %v369 = vld [vmem:[#allocation5 + $0x28] sm:$0xff]
        %v370 = vld [vmem:[#allocation5 + $0x30] sm:$0xff]
        %v371 = vld [vmem:[#allocation5 + $0x38] sm:$0xff]
        %v372 = vld [vmem:[#allocation5 + $0x40] sm:$0xff]
        %v373 = vld [vmem:[#allocation5 + $0x48] sm:$0xff]
        %v374 = vld [vmem:[#allocation5 + $0x50] sm:$0xff]
        %v375 = vld [vmem:[#allocation5 + $0x58] sm:$0xff]
        %v376 = vld [vmem:[#allocation5 + $0x60] sm:$0xff]
        %v377 = vld [vmem:[#allocation5 + $0x68] sm:$0xff]
        %v378 = vld [vmem:[#allocation5 + $0x70] sm:$0xff]
        %v379 = vld [vmem:[#allocation5 + $0x78] sm:$0xff]
        %v380 = vld [vmem:[#allocation5 + $0x80] sm:$0xff]
        %v381 = vld [vmem:[#allocation5 + $0x88] sm:$0xff]
        %v382 = vld [vmem:[#allocation5 + $0x90] sm:$0xff]
        %v383 = vld [vmem:[#allocation5 + $0x98] sm:$0xff]
        %v384 = vld [vmem:[#allocation5 + $0xa0] sm:$0xff]
        %v385 = vld [vmem:[#allocation5 + $0xa8] sm:$0xff]
        %v386 = vld [vmem:[#allocation5 + $0xb0] sm:$0xff]
        %v387 = vld [vmem:[#allocation5 + $0xb8] sm:$0xff]
        %v388 = vld [vmem:[#allocation5 + $0xc0] sm:$0xff]
        %v389 = vld [vmem:[#allocation5 + $0xc8] sm:$0xff]
        %v390 = vld [vmem:[#allocation5 + $0xd0] sm:$0xff]
        %v391 = vld [vmem:[#allocation5 + $0xd8] sm:$0xff]
        %v392 = vld [vmem:[#allocation5 + $0xe0] sm:$0xff]
        %v393 = vld [vmem:[#allocation5 + $0xe8] sm:$0xff]
        %v394 = vld [vmem:[#allocation5 + $0xf0] sm:$0xff]
        %v395 = vld [vmem:[#allocation5 + $0xf8] sm:$0xff]
        %v396 = vld [vmem:[%s2] sm:$0x3]
        %v398 = vlaneseq
        %v399 = vshrl.u32 %v398, 7
        %v400 = vsub.s32 0, %v399
        %v401 = vrot.slane %v396, %v400
        %v402 = vlaneseq
        %v403 = vshrl.u32 %v402, 7
        %v404 = vsub.s32 1, %v403
        %v405 = vrot.slane %v396, %v404
        %408 = vmatprep.subr.mxu0 %v365
        %409 = vmatpush1.msra.mxu0 %v364
        %410 = vmatprep.subr.mxu0 %v367
        %411 = vmatpush1.msra.mxu0 %v366
        %412 = vmatprep.subr.mxu0 %v369
        %413 = vmatpush1.msra.mxu0 %v368
        %414 = vmatprep.subr.mxu0 %v371
        %415 = vmatpush1.msra.mxu0 %v370
        %416 = vmatprep.subr.mxu0 %v373
        %417 = vmatpush1.msra.mxu0 %v372
        %418 = vmatprep.subr.mxu0 %v375
        %419 = vmatpush1.msra.mxu0 %v374
        %420 = vmatprep.subr.mxu0 %v377
        %421 = vmatpush1.msra.mxu0 %v376
        %422 = vmatprep.subr.mxu0 %v379
        %423 = vmatpush1.msra.mxu0 %v378
        %424 = vmatprep.subr.mxu0 %v381
        %425 = vmatpush1.msra.mxu0 %v380
        %426 = vmatprep.subr.mxu0 %v383
        %427 = vmatpush1.msra.mxu0 %v382
        %428 = vmatprep.subr.mxu0 %v385
        %429 = vmatpush1.msra.mxu0 %v384
        %430 = vmatprep.subr.mxu0 %v387
        %431 = vmatpush1.msra.mxu0 %v386
        %432 = vmatprep.subr.mxu0 %v389
        %433 = vmatpush1.msra.mxu0 %v388
        %434 = vmatprep.subr.mxu0 %v391
        %435 = vmatpush1.msra.mxu0 %v390
        %436 = vmatprep.subr.mxu0 %v393
        %437 = vmatpush1.msra.mxu0 %v392
        %438 = vmatprep.subr.mxu0 %v395
        %439 = vmatpush1.msra.mxu0 %v394
        %440 = vmatprep.subr.mxu0 0.0
        %441 = vmatpush1.msra.mxu0 0.0
        %442 = vmatprep.subr.mxu0 0.0
        %443 = vmatpush1.msra.mxu0 0.0
        %444 = vmatprep.subr.mxu0 0.0
        %445 = vmatpush1.msra.mxu0 0.0
        %446 = vmatprep.subr.mxu0 0.0
        %447 = vmatpush1.msra.mxu0 0.0
        %448 = vmatprep.subr.mxu0 0.0
        %449 = vmatpush1.msra.mxu0 0.0
        %450 = vmatprep.subr.mxu0 0.0
        %451 = vmatpush1.msra.mxu0 0.0
        %452 = vmatprep.subr.mxu0 0.0
        %453 = vmatpush1.msra.mxu0 0.0
        %454 = vmatprep.subr.mxu0 0.0
        %455 = vmatpush1.msra.mxu0 0.0
        %456 = vmatprep.subr.mxu0 0.0
        %457 = vmatpush1.msra.mxu0 0.0
        %458 = vmatprep.subr.mxu0 0.0
        %459 = vmatpush1.msra.mxu0 0.0
        %460 = vmatprep.subr.mxu0 0.0
        %461 = vmatpush1.msra.mxu0 0.0
        %462 = vmatprep.subr.mxu0 0.0
        %463 = vmatpush1.msra.mxu0 0.0
        %464 = vmatprep.subr.mxu0 0.0
        %465 = vmatpush1.msra.mxu0 0.0
        %466 = vmatprep.subr.mxu0 0.0
        %467 = vmatpush1.msra.mxu0 0.0
        %468 = vmatprep.subr.mxu0 0.0
        %469 = vmatpush1.msra.mxu0 0.0
        %470 = vmatprep.subr.mxu0 0.0
        %471 = vmatpush1.msra.mxu0 0.0
        %472 = vmatprep.mubr.f32.mxu0 0.0
        %473 = vmatmul.mubr.f32.gmra.mrb[0].mxu0 %v332
        %v474 = vpop.f32.mrb[0].mxu0
        %v475 = vadd.f32 %v401, %v474
        %v476 = vpop.f32.mrb[0].mxu0
        %v477 = vadd.f32 %v405, %v476
        %478 = vmatprep.mubr.f32.mxu0 0.0
        %479 = vmatmul.mubr.f32.gmra.mrb[0].mxu0 %v333
        %v480 = vpop.f32.mrb[0].mxu0
        %v481 = vadd.f32 %v401, %v480
        %v482 = vpop.f32.mrb[0].mxu0
        %v483 = vadd.f32 %v405, %v482
        %484 = vmatprep.mubr.f32.mxu0 0.0
        %485 = vmatmul.mubr.f32.gmra.mrb[0].mxu0 %v334
        %v486 = vpop.f32.mrb[0].mxu0
        %v487 = vadd.f32 %v401, %v486
        %v488 = vpop.f32.mrb[0].mxu0
        %v489 = vadd.f32 %v405, %v488
        %490 = vmatprep.mubr.f32.mxu0 0.0
        %491 = vmatmul.mubr.f32.gmra.mrb[0].mxu0 %v335
        %v492 = vpop.f32.mrb[0].mxu0
        %v493 = vadd.f32 %v401, %v492
        %v494 = vpop.f32.mrb[0].mxu0
        %v495 = vadd.f32 %v405, %v494
        %496 = vmatprep.mubr.f32.mxu0 0.0
        %497 = vmatmul.mubr.f32.gmra.mrb[0].mxu0 %v336
        %v498 = vpop.f32.mrb[0].mxu0
        %v499 = vadd.f32 %v401, %v498
        %v500 = vpop.f32.mrb[0].mxu0
        %v501 = vadd.f32 %v405, %v500
        %502 = vmatprep.mubr.f32.mxu0 0.0
        %503 = vmatmul.mubr.f32.gmra.mrb[0].mxu0 %v337
        %v504 = vpop.f32.mrb[0].mxu0
        %v505 = vadd.f32 %v401, %v504
        %v506 = vpop.f32.mrb[0].mxu0
        %v507 = vadd.f32 %v405, %v506
        %508 = vmatprep.mubr.f32.mxu0 0.0
        %509 = vmatmul.mubr.f32.gmra.mrb[0].mxu0 %v338
        %v510 = vpop.f32.mrb[0].mxu0
        %v511 = vadd.f32 %v401, %v510
        %v512 = vpop.f32.mrb[0].mxu0
        %v513 = vadd.f32 %v405, %v512
        %514 = vmatprep.mubr.f32.mxu0 0.0
        %515 = vmatmul.mubr.f32.gmra.mrb[0].mxu0 %v339
        %v516 = vpop.f32.mrb[0].mxu0
        %v517 = vadd.f32 %v401, %v516
        %v518 = vpop.f32.mrb[0].mxu0
        %v519 = vadd.f32 %v405, %v518
        %520 = vmatprep.mubr.f32.mxu0 0.0
        %521 = vmatmul.mubr.f32.gmra.mrb[0].mxu0 %v340
        %v522 = vpop.f32.mrb[0].mxu0
        %v523 = vadd.f32 %v401, %v522
        %v524 = vpop.f32.mrb[0].mxu0
        %v525 = vadd.f32 %v405, %v524
        %526 = vmatprep.mubr.f32.mxu0 0.0
        %527 = vmatmul.mubr.f32.gmra.mrb[0].mxu0 %v341
        %v528 = vpop.f32.mrb[0].mxu0
        %v529 = vadd.f32 %v401, %v528
        %v530 = vpop.f32.mrb[0].mxu0
        %v531 = vadd.f32 %v405, %v530
        %532 = vmatprep.mubr.f32.mxu0 0.0
        %533 = vmatmul.mubr.f32.gmra.mrb[0].mxu0 %v342
        %v534 = vpop.f32.mrb[0].mxu0
        %v535 = vadd.f32 %v401, %v534
        %v536 = vpop.f32.mrb[0].mxu0
        %v537 = vadd.f32 %v405, %v536
        %538 = vmatprep.mubr.f32.mxu0 0.0
        %539 = vmatmul.mubr.f32.gmra.mrb[0].mxu0 %v343
        %v540 = vpop.f32.mrb[0].mxu0
        %v541 = vadd.f32 %v401, %v540
        %v542 = vpop.f32.mrb[0].mxu0
        %v543 = vadd.f32 %v405, %v542
        %544 = vmatprep.mubr.f32.mxu0 0.0
        %545 = vmatmul.mubr.f32.gmra.mrb[0].mxu0 %v344
        %v546 = vpop.f32.mrb[0].mxu0
        %v547 = vadd.f32 %v401, %v546
        %v548 = vpop.f32.mrb[0].mxu0
        %v549 = vadd.f32 %v405, %v548
        %550 = vmatprep.mubr.f32.mxu0 0.0
        %551 = vmatmul.mubr.f32.gmra.mrb[0].mxu0 %v345
        %v552 = vpop.f32.mrb[0].mxu0
        %v553 = vadd.f32 %v401, %v552
        %v554 = vpop.f32.mrb[0].mxu0
        %v555 = vadd.f32 %v405, %v554
        %556 = vmatprep.mubr.f32.mxu0 0.0
        %557 = vmatmul.mubr.f32.gmra.mrb[0].mxu0 %v346
        %v558 = vpop.f32.mrb[0].mxu0
        %v559 = vadd.f32 %v401, %v558
        %v560 = vpop.f32.mrb[0].mxu0
        %v561 = vadd.f32 %v405, %v560
        %562 = vmatprep.mubr.f32.mxu0 0.0
        %563 = vmatmul.mubr.f32.gmra.mrb[0].mxu0 %v347
        %v564 = vpop.f32.mrb[0].mxu0
        %v565 = vadd.f32 %v401, %v564
        %v566 = vpop.f32.mrb[0].mxu0
        %v567 = vadd.f32 %v405, %v566
        %568 = vmatprep.mubr.f32.mxu0 0.0
        %569 = vmatmul.mubr.f32.gmra.mrb[0].mxu0 %v348
        %v570 = vpop.f32.mrb[0].mxu0
        %v571 = vadd.f32 %v401, %v570
        %v572 = vpop.f32.mrb[0].mxu0
        %v573 = vadd.f32 %v405, %v572
        %574 = vmatprep.mubr.f32.mxu0 0.0
        %575 = vmatmul.mubr.f32.gmra.mrb[0].mxu0 %v349
        %v576 = vpop.f32.mrb[0].mxu0
        %v577 = vadd.f32 %v401, %v576
        %v578 = vpop.f32.mrb[0].mxu0
        %v579 = vadd.f32 %v405, %v578
        %580 = vmatprep.mubr.f32.mxu0 0.0
        %581 = vmatmul.mubr.f32.gmra.mrb[0].mxu0 %v350
        %v582 = vpop.f32.mrb[0].mxu0
        %v583 = vadd.f32 %v401, %v582
        %v584 = vpop.f32.mrb[0].mxu0
        %v585 = vadd.f32 %v405, %v584
        %586 = vmatprep.mubr.f32.mxu0 0.0
        %587 = vmatmul.mubr.f32.gmra.mrb[0].mxu0 %v351
        %v588 = vpop.f32.mrb[0].mxu0
        %v589 = vadd.f32 %v401, %v588
        %v590 = vpop.f32.mrb[0].mxu0
        %v591 = vadd.f32 %v405, %v590
        %592 = vmatprep.mubr.f32.mxu0 0.0
        %593 = vmatmul.mubr.f32.gmra.mrb[0].mxu0 %v352
        %v594 = vpop.f32.mrb[0].mxu0
        %v595 = vadd.f32 %v401, %v594
        %v596 = vpop.f32.mrb[0].mxu0
        %v597 = vadd.f32 %v405, %v596
        %598 = vmatprep.mubr.f32.mxu0 0.0
        %599 = vmatmul.mubr.f32.gmra.mrb[0].mxu0 %v353
        %v600 = vpop.f32.mrb[0].mxu0
        %v601 = vadd.f32 %v401, %v600
        %v602 = vpop.f32.mrb[0].mxu0
        %v603 = vadd.f32 %v405, %v602
        %604 = vmatprep.mubr.f32.mxu0 0.0
        %605 = vmatmul.mubr.f32.gmra.mrb[0].mxu0 %v354
        %v606 = vpop.f32.mrb[0].mxu0
        %v607 = vadd.f32 %v401, %v606
        %v608 = vpop.f32.mrb[0].mxu0
        %v609 = vadd.f32 %v405, %v608
        %610 = vmatprep.mubr.f32.mxu0 0.0
        %611 = vmatmul.mubr.f32.gmra.mrb[0].mxu0 %v355
        %v612 = vpop.f32.mrb[0].mxu0
        %v613 = vadd.f32 %v401, %v612
        %v614 = vpop.f32.mrb[0].mxu0
        %v615 = vadd.f32 %v405, %v614
        %616 = vmatprep.mubr.f32.mxu0 0.0
        %617 = vmatmul.mubr.f32.gmra.mrb[0].mxu0 %v356
        %v618 = vpop.f32.mrb[0].mxu0
        %v619 = vadd.f32 %v401, %v618
        %v620 = vpop.f32.mrb[0].mxu0
        %v621 = vadd.f32 %v405, %v620
        %622 = vmatprep.mubr.f32.mxu0 0.0
        %623 = vmatmul.mubr.f32.gmra.mrb[0].mxu0 %v357
        %v624 = vpop.f32.mrb[0].mxu0
        %v625 = vadd.f32 %v401, %v624
        %v626 = vpop.f32.mrb[0].mxu0
        %v627 = vadd.f32 %v405, %v626
        %628 = vmatprep.mubr.f32.mxu0 0.0
        %629 = vmatmul.mubr.f32.gmra.mrb[0].mxu0 %v358
        %v630 = vpop.f32.mrb[0].mxu0
        %v631 = vadd.f32 %v401, %v630
        %v632 = vpop.f32.mrb[0].mxu0
        %v633 = vadd.f32 %v405, %v632
        %634 = vmatprep.mubr.f32.mxu0 0.0
        %635 = vmatmul.mubr.f32.gmra.mrb[0].mxu0 %v359
        %v636 = vpop.f32.mrb[0].mxu0
        %v637 = vadd.f32 %v401, %v636
        %v638 = vpop.f32.mrb[0].mxu0
        %v639 = vadd.f32 %v405, %v638
        %640 = vmatprep.mubr.f32.mxu0 0.0
        %641 = vmatmul.mubr.f32.gmra.mrb[0].mxu0 %v360
        %v642 = vpop.f32.mrb[0].mxu0
        %v643 = vadd.f32 %v401, %v642
        %v644 = vpop.f32.mrb[0].mxu0
        %v645 = vadd.f32 %v405, %v644
        %646 = vmatprep.mubr.f32.mxu0 0.0
        %647 = vmatmul.mubr.f32.gmra.mrb[0].mxu0 %v361
        %v648 = vpop.f32.mrb[0].mxu0
        %v649 = vadd.f32 %v401, %v648
        %v650 = vpop.f32.mrb[0].mxu0
        %v651 = vadd.f32 %v405, %v650
        %652 = vmatprep.mubr.f32.mxu0 0.0
        %653 = vmatmul.mubr.f32.gmra.mrb[0].mxu0 %v362
        %v654 = vpop.f32.mrb[0].mxu0
        %v655 = vadd.f32 %v401, %v654
        %v656 = vpop.f32.mrb[0].mxu0
        %v657 = vadd.f32 %v405, %v656
        %658 = vmatprep.mubr.f32.mxu0 0.0
        %659 = vmatmul.mubr.f32.gmra.mrb[0].mxu0 %v363
        %v660 = vpop.f32.mrb[0].mxu0
        %v661 = vadd.f32 %v401, %v660
        %v662 = vpop.f32.mrb[0].mxu0
        %v663 = vadd.f32 %v405, %v662
        %664 = vdwg.mxu0
        %v665 = vmul.f32 %v475, 0.01
        %v666 = vmul.f32 %v477, 0.01
        %v667 = vmul.f32 %v481, 0.01
        %v668 = vmul.f32 %v483, 0.01
        %v669 = vmul.f32 %v487, 0.01
        %v670 = vmul.f32 %v489, 0.01
        %v671 = vmul.f32 %v493, 0.01
        %v672 = vmul.f32 %v495, 0.01
        %v673 = vmul.f32 %v499, 0.01
        %v674 = vmul.f32 %v501, 0.01
        %v675 = vmul.f32 %v505, 0.01
        %v676 = vmul.f32 %v507, 0.01
        %v677 = vmul.f32 %v511, 0.01
        %v678 = vmul.f32 %v513, 0.01
        %v679 = vmul.f32 %v517, 0.01
        %v680 = vmul.f32 %v519, 0.01
        %v681 = vmul.f32 %v523, 0.01
        %v682 = vmul.f32 %v525, 0.01
        %v683 = vmul.f32 %v529, 0.01
        %v684 = vmul.f32 %v531, 0.01
        %v685 = vmul.f32 %v535, 0.01
        %v686 = vmul.f32 %v537, 0.01
        %v687 = vmul.f32 %v541, 0.01
        %v688 = vmul.f32 %v543, 0.01
        %v689 = vmul.f32 %v547, 0.01
        %v690 = vmul.f32 %v549, 0.01
        %v691 = vmul.f32 %v553, 0.01
        %v692 = vmul.f32 %v555, 0.01
        %v693 = vmul.f32 %v559, 0.01
        %v694 = vmul.f32 %v561, 0.01
        %v695 = vmul.f32 %v565, 0.01
        %v696 = vmul.f32 %v567, 0.01
        %v697 = vmul.f32 %v571, 0.01
        %v698 = vmul.f32 %v573, 0.01
        %v699 = vmul.f32 %v577, 0.01
        %v700 = vmul.f32 %v579, 0.01
        %v701 = vmul.f32 %v583, 0.01
        %v702 = vmul.f32 %v585, 0.01
        %v703 = vmul.f32 %v589, 0.01
        %v704 = vmul.f32 %v591, 0.01
        %v705 = vmul.f32 %v595, 0.01
        %v706 = vmul.f32 %v597, 0.01
        %v707 = vmul.f32 %v601, 0.01
        %v708 = vmul.f32 %v603, 0.01
        %v709 = vmul.f32 %v607, 0.01
        %v710 = vmul.f32 %v609, 0.01
        %v711 = vmul.f32 %v613, 0.01
        %v712 = vmul.f32 %v615, 0.01
        %v713 = vmul.f32 %v619, 0.01
        %v714 = vmul.f32 %v621, 0.01
        %v715 = vmul.f32 %v625, 0.01
        %v716 = vmul.f32 %v627, 0.01
        %v717 = vmul.f32 %v631, 0.01
        %v718 = vmul.f32 %v633, 0.01
        %v719 = vmul.f32 %v637, 0.01
        %v720 = vmul.f32 %v639, 0.01
        %v721 = vmul.f32 %v643, 0.01
        %v722 = vmul.f32 %v645, 0.01
        %v723 = vmul.f32 %v649, 0.01
        %v724 = vmul.f32 %v651, 0.01
        %v725 = vmul.f32 %v655, 0.01
        %v726 = vmul.f32 %v657, 0.01
        %v727 = vmul.f32 %v661, 0.01
        %v728 = vmul.f32 %v663, 0.01
        %v729 = vmax.f32 %v475, %v665
        %v730 = vmax.f32 %v477, %v666
        %v731 = vmax.f32 %v481, %v667
        %v732 = vmax.f32 %v483, %v668
        %v733 = vmax.f32 %v487, %v669
        %v734 = vmax.f32 %v489, %v670
        %v735 = vmax.f32 %v493, %v671
        %v736 = vmax.f32 %v495, %v672
        %v737 = vmax.f32 %v499, %v673
        %v738 = vmax.f32 %v501, %v674
        %v739 = vmax.f32 %v505, %v675
        %v740 = vmax.f32 %v507, %v676
        %v741 = vmax.f32 %v511, %v677
        %v742 = vmax.f32 %v513, %v678
        %v743 = vmax.f32 %v517, %v679
        %v744 = vmax.f32 %v519, %v680
        %v745 = vmax.f32 %v523, %v681
        %v746 = vmax.f32 %v525, %v682
        %v747 = vmax.f32 %v529, %v683
        %v748 = vmax.f32 %v531, %v684
        %v749 = vmax.f32 %v535, %v685
        %v750 = vmax.f32 %v537, %v686
        %v751 = vmax.f32 %v541, %v687
        %v752 = vmax.f32 %v543, %v688
        %v753 = vmax.f32 %v547, %v689
        %v754 = vmax.f32 %v549, %v690
        %v755 = vmax.f32 %v553, %v691
        %v756 = vmax.f32 %v555, %v692
        %v757 = vmax.f32 %v559, %v693
        %v758 = vmax.f32 %v561, %v694
        %v759 = vmax.f32 %v565, %v695
        %v760 = vmax.f32 %v567, %v696
        %v761 = vmax.f32 %v571, %v697
        %v762 = vmax.f32 %v573, %v698
        %v763 = vmax.f32 %v577, %v699
        %v764 = vmax.f32 %v579, %v700
        %v765 = vmax.f32 %v583, %v701
        %v766 = vmax.f32 %v585, %v702
        %v767 = vmax.f32 %v589, %v703
        %v768 = vmax.f32 %v591, %v704
        %v769 = vmax.f32 %v595, %v705
        %v770 = vmax.f32 %v597, %v706
        %v771 = vmax.f32 %v601, %v707
        %v772 = vmax.f32 %v603, %v708
        %v773 = vmax.f32 %v607, %v709
        %v774 = vmax.f32 %v609, %v710
        %v775 = vmax.f32 %v613, %v711
        %v776 = vmax.f32 %v615, %v712
        %v777 = vmax.f32 %v619, %v713
        %v778 = vmax.f32 %v621, %v714
        %v779 = vmax.f32 %v625, %v715
        %v780 = vmax.f32 %v627, %v716
        %v781 = vmax.f32 %v631, %v717
        %v782 = vmax.f32 %v633, %v718
        %v783 = vmax.f32 %v637, %v719
        %v784 = vmax.f32 %v639, %v720
        %v785 = vmax.f32 %v643, %v721
        %v786 = vmax.f32 %v645, %v722
        %v787 = vmax.f32 %v649, %v723
        %v788 = vmax.f32 %v651, %v724
        %v789 = vmax.f32 %v655, %v725
        %v790 = vmax.f32 %v657, %v726
        %v791 = vmax.f32 %v661, %v727
        %v792 = vmax.f32 %v663, %v728
        %v793 = vld [vmem:[#allocation7] sm:$0xff]
        %v794 = vld [vmem:[#allocation7 + $0x8] sm:$0xff]
        %v795 = vld [vmem:[#allocation7 + $0x10] sm:$0xff]
        %v796 = vld [vmem:[#allocation7 + $0x18] sm:$0xff]
        %v797 = vld [vmem:[#allocation7 + $0x20] sm:$0xff]
        %v798 = vld [vmem:[#allocation7 + $0x28] sm:$0xff]
        %v799 = vld [vmem:[#allocation7 + $0x30] sm:$0xff]
        %v800 = vld [vmem:[#allocation7 + $0x38] sm:$0xff]
        %v801 = vld [vmem:[#allocation7 + $0x40] sm:$0xff]
        %v802 = vld [vmem:[#allocation7 + $0x48] sm:$0xff]
        %v803 = vld [vmem:[#allocation7 + $0x50] sm:$0xff]
        %v804 = vld [vmem:[#allocation7 + $0x58] sm:$0xff]
        %v805 = vld [vmem:[#allocation7 + $0x60] sm:$0xff]
        %v806 = vld [vmem:[#allocation7 + $0x68] sm:$0xff]
        %v807 = vld [vmem:[#allocation7 + $0x70] sm:$0xff]
        %v808 = vld [vmem:[#allocation7 + $0x78] sm:$0xff]
        %v809 = vld [vmem:[#allocation7 + $0x80] sm:$0xff]
        %v810 = vld [vmem:[#allocation7 + $0x88] sm:$0xff]
        %v811 = vld [vmem:[#allocation7 + $0x90] sm:$0xff]
        %v812 = vld [vmem:[#allocation7 + $0x98] sm:$0xff]
        %v813 = vld [vmem:[#allocation7 + $0xa0] sm:$0xff]
        %v814 = vld [vmem:[#allocation7 + $0xa8] sm:$0xff]
        %v815 = vld [vmem:[#allocation7 + $0xb0] sm:$0xff]
        %v816 = vld [vmem:[#allocation7 + $0xb8] sm:$0xff]
        %v817 = vld [vmem:[#allocation7 + $0xc0] sm:$0xff]
        %v818 = vld [vmem:[#allocation7 + $0xc8] sm:$0xff]
        %v819 = vld [vmem:[#allocation7 + $0xd0] sm:$0xff]
        %v820 = vld [vmem:[#allocation7 + $0xd8] sm:$0xff]
        %v821 = vld [vmem:[#allocation7 + $0xe0] sm:$0xff]
        %v822 = vld [vmem:[#allocation7 + $0xe8] sm:$0xff]
        %v823 = vld [vmem:[#allocation7 + $0xf0] sm:$0xff]
        %v824 = vld [vmem:[#allocation7 + $0xf8] sm:$0xff]
        %v825 = vld [vmem:[%s4] sm:$0x1]
        %v827 = vlaneseq
        %v828 = vshrl.u32 %v827, 7
        %v829 = vsub.s32 0, %v828
        %v830 = vrot.slane %v825, %v829
        %832 = vmatprep.subr.mxu0 0.0
        %833 = vmatpush1.msra.mxu0 %v793
        %834 = vmatprep.subr.mxu0 0.0
        %835 = vmatpush1.msra.mxu0 %v794
        %836 = vmatprep.subr.mxu0 0.0
        %837 = vmatpush1.msra.mxu0 %v795
        %838 = vmatprep.subr.mxu0 0.0
        %839 = vmatpush1.msra.mxu0 %v796
        %840 = vmatprep.subr.mxu0 0.0
        %841 = vmatpush1.msra.mxu0 %v797
        %842 = vmatprep.subr.mxu0 0.0
        %843 = vmatpush1.msra.mxu0 %v798
        %844 = vmatprep.subr.mxu0 0.0
        %845 = vmatpush1.msra.mxu0 %v799
        %846 = vmatprep.subr.mxu0 0.0
        %847 = vmatpush1.msra.mxu0 %v800
        %848 = vmatprep.subr.mxu0 0.0
        %849 = vmatpush1.msra.mxu0 %v801
        %850 = vmatprep.subr.mxu0 0.0
        %851 = vmatpush1.msra.mxu0 %v802
        %852 = vmatprep.subr.mxu0 0.0
        %853 = vmatpush1.msra.mxu0 %v803
        %854 = vmatprep.subr.mxu0 0.0
        %855 = vmatpush1.msra.mxu0 %v804
        %856 = vmatprep.subr.mxu0 0.0
        %857 = vmatpush1.msra.mxu0 %v805
        %858 = vmatprep.subr.mxu0 0.0
        %859 = vmatpush1.msra.mxu0 %v806
        %860 = vmatprep.subr.mxu0 0.0
        %861 = vmatpush1.msra.mxu0 %v807
        %862 = vmatprep.subr.mxu0 0.0
        %863 = vmatpush1.msra.mxu0 %v808
        %864 = vmatprep.subr.mxu0 0.0
        %865 = vmatpush1.msra.mxu0 %v809
        %866 = vmatprep.subr.mxu0 0.0
        %867 = vmatpush1.msra.mxu0 %v810
        %868 = vmatprep.subr.mxu0 0.0
        %869 = vmatpush1.msra.mxu0 %v811
        %870 = vmatprep.subr.mxu0 0.0
        %871 = vmatpush1.msra.mxu0 %v812
        %872 = vmatprep.subr.mxu0 0.0
        %873 = vmatpush1.msra.mxu0 %v813
        %874 = vmatprep.subr.mxu0 0.0
        %875 = vmatpush1.msra.mxu0 %v814
        %876 = vmatprep.subr.mxu0 0.0
        %877 = vmatpush1.msra.mxu0 %v815
        %878 = vmatprep.subr.mxu0 0.0
        %879 = vmatpush1.msra.mxu0 %v816
        %880 = vmatprep.subr.mxu0 0.0
        %881 = vmatpush1.msra.mxu0 %v817
        %882 = vmatprep.subr.mxu0 0.0
        %883 = vmatpush1.msra.mxu0 %v818
        %884 = vmatprep.subr.mxu0 0.0
        %885 = vmatpush1.msra.mxu0 %v819
        %886 = vmatprep.subr.mxu0 0.0
        %887 = vmatpush1.msra.mxu0 %v820
        %888 = vmatprep.subr.mxu0 0.0
        %889 = vmatpush1.msra.mxu0 %v821
        %890 = vmatprep.subr.mxu0 0.0
        %891 = vmatpush1.msra.mxu0 %v822
        %892 = vmatprep.subr.mxu0 0.0
        %893 = vmatpush1.msra.mxu0 %v823
        %894 = vmatprep.subr.mxu0 0.0
        %895 = vmatpush1.msra.mxu0 %v824
        %896 = vmatprep.mubr.f32.mxu0 %v730
        %897 = vmatmul.mubr.f32.gmra.mrb[0].mxu0 %v729
        %v898 = vpop.f32.mrb[0].mxu0
        %v899 = vadd.f32 %v830, %v898
        %v900 = vpop.f32.mrb[0].mxu0
        %901 = vmatprep.mubr.f32.mxu0 %v732
        %902 = vmatmul.mubr.f32.gmra.mrb[0].mxu0 %v731
        %v903 = vpop.f32.mrb[0].mxu0
        %v904 = vadd.f32 %v830, %v903
        %v905 = vpop.f32.mrb[0].mxu0
        %906 = vmatprep.mubr.f32.mxu0 %v734
        %907 = vmatmul.mubr.f32.gmra.mrb[0].mxu0 %v733
        %v908 = vpop.f32.mrb[0].mxu0
        %v909 = vadd.f32 %v830, %v908
        %v910 = vpop.f32.mrb[0].mxu0
        %911 = vmatprep.mubr.f32.mxu0 %v736
        %912 = vmatmul.mubr.f32.gmra.mrb[0].mxu0 %v735
        %v913 = vpop.f32.mrb[0].mxu0
        %v914 = vadd.f32 %v830, %v913
        %v915 = vpop.f32.mrb[0].mxu0
        %916 = vmatprep.mubr.f32.mxu0 %v738
        %917 = vmatmul.mubr.f32.gmra.mrb[0].mxu0 %v737
        %v918 = vpop.f32.mrb[0].mxu0
        %v919 = vadd.f32 %v830, %v918
        %v920 = vpop.f32.mrb[0].mxu0
        %921 = vmatprep.mubr.f32.mxu0 %v740
        %922 = vmatmul.mubr.f32.gmra.mrb[0].mxu0 %v739
        %v923 = vpop.f32.mrb[0].mxu0
        %v924 = vadd.f32 %v830, %v923
        %v925 = vpop.f32.mrb[0].mxu0
        %926 = vmatprep.mubr.f32.mxu0 %v742
        %927 = vmatmul.mubr.f32.gmra.mrb[0].mxu0 %v741
        %v928 = vpop.f32.mrb[0].mxu0
        %v929 = vadd.f32 %v830, %v928
        %v930 = vpop.f32.mrb[0].mxu0
        %931 = vmatprep.mubr.f32.mxu0 %v744
        %932 = vmatmul.mubr.f32.gmra.mrb[0].mxu0 %v743
        %v933 = vpop.f32.mrb[0].mxu0
        %v934 = vadd.f32 %v830, %v933
        %v935 = vpop.f32.mrb[0].mxu0
        %936 = vmatprep.mubr.f32.mxu0 %v746
        %937 = vmatmul.mubr.f32.gmra.mrb[0].mxu0 %v745
        %v938 = vpop.f32.mrb[0].mxu0
        %v939 = vadd.f32 %v830, %v938
        %v940 = vpop.f32.mrb[0].mxu0
        %941 = vmatprep.mubr.f32.mxu0 %v748
        %942 = vmatmul.mubr.f32.gmra.mrb[0].mxu0 %v747
        %v943 = vpop.f32.mrb[0].mxu0
        %v944 = vadd.f32 %v830, %v943
        %v945 = vpop.f32.mrb[0].mxu0
        %946 = vmatprep.mubr.f32.mxu0 %v750
        %947 = vmatmul.mubr.f32.gmra.mrb[0].mxu0 %v749
        %v948 = vpop.f32.mrb[0].mxu0
        %v949 = vadd.f32 %v830, %v948
        %v950 = vpop.f32.mrb[0].mxu0
        %951 = vmatprep.mubr.f32.mxu0 %v752
        %952 = vmatmul.mubr.f32.gmra.mrb[0].mxu0 %v751
        %v953 = vpop.f32.mrb[0].mxu0
        %v954 = vadd.f32 %v830, %v953
        %v955 = vpop.f32.mrb[0].mxu0
        %956 = vmatprep.mubr.f32.mxu0 %v754
        %957 = vmatmul.mubr.f32.gmra.mrb[0].mxu0 %v753
        %v958 = vpop.f32.mrb[0].mxu0
        %v959 = vadd.f32 %v830, %v958
        %v960 = vpop.f32.mrb[0].mxu0
        %961 = vmatprep.mubr.f32.mxu0 %v756
        %962 = vmatmul.mubr.f32.gmra.mrb[0].mxu0 %v755
        %v963 = vpop.f32.mrb[0].mxu0
        %v964 = vadd.f32 %v830, %v963
        %v965 = vpop.f32.mrb[0].mxu0
        %966 = vmatprep.mubr.f32.mxu0 %v758
        %967 = vmatmul.mubr.f32.gmra.mrb[0].mxu0 %v757
        %v968 = vpop.f32.mrb[0].mxu0
        %v969 = vadd.f32 %v830, %v968
        %v970 = vpop.f32.mrb[0].mxu0
        %971 = vmatprep.mubr.f32.mxu0 %v760
        %972 = vmatmul.mubr.f32.gmra.mrb[0].mxu0 %v759
        %v973 = vpop.f32.mrb[0].mxu0
        %v974 = vadd.f32 %v830, %v973
        %v975 = vpop.f32.mrb[0].mxu0
        %976 = vmatprep.mubr.f32.mxu0 %v762
        %977 = vmatmul.mubr.f32.gmra.mrb[0].mxu0 %v761
        %v978 = vpop.f32.mrb[0].mxu0
        %v979 = vadd.f32 %v830, %v978
        %v980 = vpop.f32.mrb[0].mxu0
        %981 = vmatprep.mubr.f32.mxu0 %v764
        %982 = vmatmul.mubr.f32.gmra.mrb[0].mxu0 %v763
        %v983 = vpop.f32.mrb[0].mxu0
        %v984 = vadd.f32 %v830, %v983
        %v985 = vpop.f32.mrb[0].mxu0
        %986 = vmatprep.mubr.f32.mxu0 %v766
        %987 = vmatmul.mubr.f32.gmra.mrb[0].mxu0 %v765
        %v988 = vpop.f32.mrb[0].mxu0
        %v989 = vadd.f32 %v830, %v988
        %v990 = vpop.f32.mrb[0].mxu0
        %991 = vmatprep.mubr.f32.mxu0 %v768
        %992 = vmatmul.mubr.f32.gmra.mrb[0].mxu0 %v767
        %v993 = vpop.f32.mrb[0].mxu0
        %v994 = vadd.f32 %v830, %v993
        %v995 = vpop.f32.mrb[0].mxu0
        %996 = vmatprep.mubr.f32.mxu0 %v770
        %997 = vmatmul.mubr.f32.gmra.mrb[0].mxu0 %v769
        %v998 = vpop.f32.mrb[0].mxu0
        %v999 = vadd.f32 %v830, %v998
        %v1000 = vpop.f32.mrb[0].mxu0
        %1001 = vmatprep.mubr.f32.mxu0 %v772
        %1002 = vmatmul.mubr.f32.gmra.mrb[0].mxu0 %v771
        %v1003 = vpop.f32.mrb[0].mxu0
        %v1004 = vadd.f32 %v830, %v1003
        %v1005 = vpop.f32.mrb[0].mxu0
        %1006 = vmatprep.mubr.f32.mxu0 %v774
        %1007 = vmatmul.mubr.f32.gmra.mrb[0].mxu0 %v773
        %v1008 = vpop.f32.mrb[0].mxu0
        %v1009 = vadd.f32 %v830, %v1008
        %v1010 = vpop.f32.mrb[0].mxu0
        %1011 = vmatprep.mubr.f32.mxu0 %v776
        %1012 = vmatmul.mubr.f32.gmra.mrb[0].mxu0 %v775
        %v1013 = vpop.f32.mrb[0].mxu0
        %v1014 = vadd.f32 %v830, %v1013
        %v1015 = vpop.f32.mrb[0].mxu0
        %1016 = vmatprep.mubr.f32.mxu0 %v778
        %1017 = vmatmul.mubr.f32.gmra.mrb[0].mxu0 %v777
        %v1018 = vpop.f32.mrb[0].mxu0
        %v1019 = vadd.f32 %v830, %v1018
        %v1020 = vpop.f32.mrb[0].mxu0
        %1021 = vmatprep.mubr.f32.mxu0 %v780
        %1022 = vmatmul.mubr.f32.gmra.mrb[0].mxu0 %v779
        %v1023 = vpop.f32.mrb[0].mxu0
        %v1024 = vadd.f32 %v830, %v1023
        %v1025 = vpop.f32.mrb[0].mxu0
        %1026 = vmatprep.mubr.f32.mxu0 %v782
        %1027 = vmatmul.mubr.f32.gmra.mrb[0].mxu0 %v781
        %v1028 = vpop.f32.mrb[0].mxu0
        %v1029 = vadd.f32 %v830, %v1028
        %v1030 = vpop.f32.mrb[0].mxu0
        %1031 = vmatprep.mubr.f32.mxu0 %v784
        %1032 = vmatmul.mubr.f32.gmra.mrb[0].mxu0 %v783
        %v1033 = vpop.f32.mrb[0].mxu0
        %v1034 = vadd.f32 %v830, %v1033
        %v1035 = vpop.f32.mrb[0].mxu0
        %1036 = vmatprep.mubr.f32.mxu0 %v786
        %1037 = vmatmul.mubr.f32.gmra.mrb[0].mxu0 %v785
        %v1038 = vpop.f32.mrb[0].mxu0
        %v1039 = vadd.f32 %v830, %v1038
        %v1040 = vpop.f32.mrb[0].mxu0
        %1041 = vmatprep.mubr.f32.mxu0 %v788
        %1042 = vmatmul.mubr.f32.gmra.mrb[0].mxu0 %v787
        %v1043 = vpop.f32.mrb[0].mxu0
        %v1044 = vadd.f32 %v830, %v1043
        %v1045 = vpop.f32.mrb[0].mxu0
        %1046 = vmatprep.mubr.f32.mxu0 %v790
        %1047 = vmatmul.mubr.f32.gmra.mrb[0].mxu0 %v789
        %v1048 = vpop.f32.mrb[0].mxu0
        %v1049 = vadd.f32 %v830, %v1048
        %v1050 = vpop.f32.mrb[0].mxu0
        %1051 = vmatprep.mubr.f32.mxu0 %v792
        %1052 = vmatmul.mubr.f32.gmra.mrb[0].mxu0 %v791
        %v1053 = vpop.f32.mrb[0].mxu0
        %v1054 = vadd.f32 %v830, %v1053
        %v1055 = vpop.f32.mrb[0].mxu0
        %1056 = vdwg.mxu0
        %v1057 = vmul.f32 %v899, 0.01
        %v1058 = vmul.f32 %v904, 0.01
        %v1059 = vmul.f32 %v909, 0.01
        %v1060 = vmul.f32 %v914, 0.01
        %v1061 = vmul.f32 %v919, 0.01
        %v1062 = vmul.f32 %v924, 0.01
        %v1063 = vmul.f32 %v929, 0.01
        %v1064 = vmul.f32 %v934, 0.01
        %v1065 = vmul.f32 %v939, 0.01
        %v1066 = vmul.f32 %v944, 0.01
        %v1067 = vmul.f32 %v949, 0.01
        %v1068 = vmul.f32 %v954, 0.01
        %v1069 = vmul.f32 %v959, 0.01
        %v1070 = vmul.f32 %v964, 0.01
        %v1071 = vmul.f32 %v969, 0.01
        %v1072 = vmul.f32 %v974, 0.01
        %v1073 = vmul.f32 %v979, 0.01
        %v1074 = vmul.f32 %v984, 0.01
        %v1075 = vmul.f32 %v989, 0.01
        %v1076 = vmul.f32 %v994, 0.01
        %v1077 = vmul.f32 %v999, 0.01
        %v1078 = vmul.f32 %v1004, 0.01
        %v1079 = vmul.f32 %v1009, 0.01
        %v1080 = vmul.f32 %v1014, 0.01
        %v1081 = vmul.f32 %v1019, 0.01
        %v1082 = vmul.f32 %v1024, 0.01
        %v1083 = vmul.f32 %v1029, 0.01
        %v1084 = vmul.f32 %v1034, 0.01
        %v1085 = vmul.f32 %v1039, 0.01
        %v1086 = vmul.f32 %v1044, 0.01
        %v1087 = vmul.f32 %v1049, 0.01
        %v1088 = vmul.f32 %v1054, 0.01
        %v1089 = vmax.f32 %v899, %v1057
        %v1090 = vmax.f32 %v904, %v1058
        %v1091 = vmax.f32 %v909, %v1059
        %v1092 = vmax.f32 %v914, %v1060
        %v1093 = vmax.f32 %v919, %v1061
        %v1094 = vmax.f32 %v924, %v1062
        %v1095 = vmax.f32 %v929, %v1063
        %v1096 = vmax.f32 %v934, %v1064
        %v1097 = vmax.f32 %v939, %v1065
        %v1098 = vmax.f32 %v944, %v1066
        %v1099 = vmax.f32 %v949, %v1067
        %v1100 = vmax.f32 %v954, %v1068
        %v1101 = vmax.f32 %v959, %v1069
        %v1102 = vmax.f32 %v964, %v1070
        %v1103 = vmax.f32 %v969, %v1071
        %v1104 = vmax.f32 %v974, %v1072
        %v1105 = vmax.f32 %v979, %v1073
        %v1106 = vmax.f32 %v984, %v1074
        %v1107 = vmax.f32 %v989, %v1075
        %v1108 = vmax.f32 %v994, %v1076
        %v1109 = vmax.f32 %v999, %v1077
        %v1110 = vmax.f32 %v1004, %v1078
        %v1111 = vmax.f32 %v1009, %v1079
        %v1112 = vmax.f32 %v1014, %v1080
        %v1113 = vmax.f32 %v1019, %v1081
        %v1114 = vmax.f32 %v1024, %v1082
        %v1115 = vmax.f32 %v1029, %v1083
        %v1116 = vmax.f32 %v1034, %v1084
        %v1117 = vmax.f32 %v1039, %v1085
        %v1118 = vmax.f32 %v1044, %v1086
        %v1119 = vmax.f32 %v1049, %v1087
        %v1120 = vmax.f32 %v1054, %v1088
        %v1121 = vld [vmem:[%s5] sm:$0x1]
        %v1123 = vlaneseq
        %v1124 = vshrl.u32 %v1123, 7
        %v1125 = vsub.s32 0, %v1124
        %v1126 = vrot.slane %v1121, %v1125
        %v1128 = vmul.f32 %v1089, %v1126
        %v1129 = vmul.f32 %v1090, %v1126
        %v1130 = vmul.f32 %v1091, %v1126
        %v1131 = vmul.f32 %v1092, %v1126
        %v1132 = vmul.f32 %v1093, %v1126
        %v1133 = vmul.f32 %v1094, %v1126
        %v1134 = vmul.f32 %v1095, %v1126
        %v1135 = vmul.f32 %v1096, %v1126
        %v1136 = vmul.f32 %v1097, %v1126
        %v1137 = vmul.f32 %v1098, %v1126
        %v1138 = vmul.f32 %v1099, %v1126
        %v1139 = vmul.f32 %v1100, %v1126
        %v1140 = vmul.f32 %v1101, %v1126
        %v1141 = vmul.f32 %v1102, %v1126
        %v1142 = vmul.f32 %v1103, %v1126
        %v1143 = vmul.f32 %v1104, %v1126
        %v1144 = vmul.f32 %v1105, %v1126
        %v1145 = vmul.f32 %v1106, %v1126
        %v1146 = vmul.f32 %v1107, %v1126
        %v1147 = vmul.f32 %v1108, %v1126
        %v1148 = vmul.f32 %v1109, %v1126
        %v1149 = vmul.f32 %v1110, %v1126
        %v1150 = vmul.f32 %v1111, %v1126
        %v1151 = vmul.f32 %v1112, %v1126
        %v1152 = vmul.f32 %v1113, %v1126
        %v1153 = vmul.f32 %v1114, %v1126
        %v1154 = vmul.f32 %v1115, %v1126
        %v1155 = vmul.f32 %v1116, %v1126
        %v1156 = vmul.f32 %v1117, %v1126
        %v1157 = vmul.f32 %v1118, %v1126
        %v1158 = vmul.f32 %v1119, %v1126
        %v1159 = vmul.f32 %v1120, %v1126
        %1160 = vadd.xlane.f32.xlu0 %v1128
        %v1161 = vpop.xlane.xlu0 %1160
        %1162 = vadd.xlane.f32.xlu0 %v1129
        %v1163 = vpop.xlane.xlu0 %1162
        %1164 = vadd.xlane.f32.xlu0 %v1130
        %v1165 = vpop.xlane.xlu0 %1164
        %1166 = vadd.xlane.f32.xlu0 %v1131
        %v1167 = vpop.xlane.xlu0 %1166
        %1168 = vadd.xlane.f32.xlu0 %v1132
        %v1169 = vpop.xlane.xlu0 %1168
        %1170 = vadd.xlane.f32.xlu0 %v1133
        %v1171 = vpop.xlane.xlu0 %1170
        %1172 = vadd.xlane.f32.xlu0 %v1134
        %v1173 = vpop.xlane.xlu0 %1172
        %1174 = vadd.xlane.f32.xlu0 %v1135
        %v1175 = vpop.xlane.xlu0 %1174
        %1176 = vadd.xlane.f32.xlu0 %v1136
        %v1177 = vpop.xlane.xlu0 %1176
        %1178 = vadd.xlane.f32.xlu0 %v1137
        %v1179 = vpop.xlane.xlu0 %1178
        %1180 = vadd.xlane.f32.xlu0 %v1138
        %v1181 = vpop.xlane.xlu0 %1180
        %1182 = vadd.xlane.f32.xlu0 %v1139
        %v1183 = vpop.xlane.xlu0 %1182
        %1184 = vadd.xlane.f32.xlu0 %v1140
        %v1185 = vpop.xlane.xlu0 %1184
        %1186 = vadd.xlane.f32.xlu0 %v1141
        %v1187 = vpop.xlane.xlu0 %1186
        %1188 = vadd.xlane.f32.xlu0 %v1142
        %v1189 = vpop.xlane.xlu0 %1188
        %1190 = vadd.xlane.f32.xlu0 %v1143
        %v1191 = vpop.xlane.xlu0 %1190
        %1192 = vadd.xlane.f32.xlu0 %v1144
        %v1193 = vpop.xlane.xlu0 %1192
        %1194 = vadd.xlane.f32.xlu0 %v1145
        %v1195 = vpop.xlane.xlu0 %1194
        %1196 = vadd.xlane.f32.xlu0 %v1146
        %v1197 = vpop.xlane.xlu0 %1196
        %1198 = vadd.xlane.f32.xlu0 %v1147
        %v1199 = vpop.xlane.xlu0 %1198
        %1200 = vadd.xlane.f32.xlu0 %v1148
        %v1201 = vpop.xlane.xlu0 %1200
        %1202 = vadd.xlane.f32.xlu0 %v1149
        %v1203 = vpop.xlane.xlu0 %1202
        %1204 = vadd.xlane.f32.xlu0 %v1150
        %v1205 = vpop.xlane.xlu0 %1204
        %1206 = vadd.xlane.f32.xlu0 %v1151
        %v1207 = vpop.xlane.xlu0 %1206
        %1208 = vadd.xlane.f32.xlu0 %v1152
        %v1209 = vpop.xlane.xlu0 %1208
        %1210 = vadd.xlane.f32.xlu0 %v1153
        %v1211 = vpop.xlane.xlu0 %1210
        %1212 = vadd.xlane.f32.xlu0 %v1154
        %v1213 = vpop.xlane.xlu0 %1212
        %1214 = vadd.xlane.f32.xlu0 %v1155
        %v1215 = vpop.xlane.xlu0 %1214
        %1216 = vadd.xlane.f32.xlu0 %v1156
        %v1217 = vpop.xlane.xlu0 %1216
        %1218 = vadd.xlane.f32.xlu0 %v1157
        %v1219 = vpop.xlane.xlu0 %1218
        %1220 = vadd.xlane.f32.xlu0 %v1158
        %v1221 = vpop.xlane.xlu0 %1220
        %1222 = vadd.xlane.f32.xlu0 %v1159
        %v1223 = vpop.xlane.xlu0 %1222
        %v1224 = vld [vmem:[#allocation2] sm:$0x1]
        %v1226 = vlaneseq
        %v1227 = vshrl.u32 %v1226, 7
        %v1228 = vsub.s32 0, %v1227
        %v1229 = vrot.slane %v1224, %v1228
        %v1231 = vadd.f32 %v1161, %v1229
        %v1232 = vadd.f32 %v1163, %v1229
        %v1233 = vadd.f32 %v1165, %v1229
        %v1234 = vadd.f32 %v1167, %v1229
        %v1235 = vadd.f32 %v1169, %v1229
        %v1236 = vadd.f32 %v1171, %v1229
        %v1237 = vadd.f32 %v1173, %v1229
        %v1238 = vadd.f32 %v1175, %v1229
        %v1239 = vadd.f32 %v1177, %v1229
        %v1240 = vadd.f32 %v1179, %v1229
        %v1241 = vadd.f32 %v1181, %v1229
        %v1242 = vadd.f32 %v1183, %v1229
        %v1243 = vadd.f32 %v1185, %v1229
        %v1244 = vadd.f32 %v1187, %v1229
        %v1245 = vadd.f32 %v1189, %v1229
        %v1246 = vadd.f32 %v1191, %v1229
        %v1247 = vadd.f32 %v1193, %v1229
        %v1248 = vadd.f32 %v1195, %v1229
        %v1249 = vadd.f32 %v1197, %v1229
        %v1250 = vadd.f32 %v1199, %v1229
        %v1251 = vadd.f32 %v1201, %v1229
        %v1252 = vadd.f32 %v1203, %v1229
        %v1253 = vadd.f32 %v1205, %v1229
        %v1254 = vadd.f32 %v1207, %v1229
        %v1255 = vadd.f32 %v1209, %v1229
        %v1256 = vadd.f32 %v1211, %v1229
        %v1257 = vadd.f32 %v1213, %v1229
        %v1258 = vadd.f32 %v1215, %v1229
        %v1259 = vadd.f32 %v1217, %v1229
        %v1260 = vadd.f32 %v1219, %v1229
        %v1261 = vadd.f32 %v1221, %v1229
        %v1262 = vadd.f32 %v1223, %v1229
        %v1263 = vmul.f32 %v1231, 0.01
        %v1264 = vmul.f32 %v1232, 0.01
        %v1265 = vmul.f32 %v1233, 0.01
        %v1266 = vmul.f32 %v1234, 0.01
        %v1267 = vmul.f32 %v1235, 0.01
        %v1268 = vmul.f32 %v1236, 0.01
        %v1269 = vmul.f32 %v1237, 0.01
        %v1270 = vmul.f32 %v1238, 0.01
        %v1271 = vmul.f32 %v1239, 0.01
        %v1272 = vmul.f32 %v1240, 0.01
        %v1273 = vmul.f32 %v1241, 0.01
        %v1274 = vmul.f32 %v1242, 0.01
        %v1275 = vmul.f32 %v1243, 0.01
        %v1276 = vmul.f32 %v1244, 0.01
        %v1277 = vmul.f32 %v1245, 0.01
        %v1278 = vmul.f32 %v1246, 0.01
        %v1279 = vmul.f32 %v1247, 0.01
        %v1280 = vmul.f32 %v1248, 0.01
        %v1281 = vmul.f32 %v1249, 0.01
        %v1282 = vmul.f32 %v1250, 0.01
        %v1283 = vmul.f32 %v1251, 0.01
        %v1284 = vmul.f32 %v1252, 0.01
        %v1285 = vmul.f32 %v1253, 0.01
        %v1286 = vmul.f32 %v1254, 0.01
        %v1287 = vmul.f32 %v1255, 0.01
        %v1288 = vmul.f32 %v1256, 0.01
        %v1289 = vmul.f32 %v1257, 0.01
        %v1290 = vmul.f32 %v1258, 0.01
        %v1291 = vmul.f32 %v1259, 0.01
        %v1292 = vmul.f32 %v1260, 0.01
        %v1293 = vmul.f32 %v1261, 0.01
        %v1294 = vmul.f32 %v1262, 0.01
        %v1295 = vmax.f32 %v1231, %v1263
        %v1296 = vmax.f32 %v1232, %v1264
        %v1297 = vmax.f32 %v1233, %v1265
        %v1298 = vmax.f32 %v1234, %v1266
        %v1299 = vmax.f32 %v1235, %v1267
        %v1300 = vmax.f32 %v1236, %v1268
        %v1301 = vmax.f32 %v1237, %v1269
        %v1302 = vmax.f32 %v1238, %v1270
        %v1303 = vmax.f32 %v1239, %v1271
        %v1304 = vmax.f32 %v1240, %v1272
        %v1305 = vmax.f32 %v1241, %v1273
        %v1306 = vmax.f32 %v1242, %v1274
        %v1307 = vmax.f32 %v1243, %v1275
        %v1308 = vmax.f32 %v1244, %v1276
        %v1309 = vmax.f32 %v1245, %v1277
        %v1310 = vmax.f32 %v1246, %v1278
        %v1311 = vmax.f32 %v1247, %v1279
        %v1312 = vmax.f32 %v1248, %v1280
        %v1313 = vmax.f32 %v1249, %v1281
        %v1314 = vmax.f32 %v1250, %v1282
        %v1315 = vmax.f32 %v1251, %v1283
        %v1316 = vmax.f32 %v1252, %v1284
        %v1317 = vmax.f32 %v1253, %v1285
        %v1318 = vmax.f32 %v1254, %v1286
        %v1319 = vmax.f32 %v1255, %v1287
        %v1320 = vmax.f32 %v1256, %v1288
        %v1321 = vmax.f32 %v1257, %v1289
        %v1322 = vmax.f32 %v1258, %v1290
        %v1323 = vmax.f32 %v1259, %v1291
        %v1324 = vmax.f32 %v1260, %v1292
        %v1325 = vmax.f32 %v1261, %v1293
        %v1326 = vmax.f32 %v1262, %v1294
        %v1327 = vsub.f32 0.0, %v1295
        %v1328 = vsub.f32 0.0, %v1296
        %v1329 = vsub.f32 0.0, %v1297
        %v1330 = vsub.f32 0.0, %v1298
        %v1331 = vsub.f32 0.0, %v1299
        %v1332 = vsub.f32 0.0, %v1300
        %v1333 = vsub.f32 0.0, %v1301
        %v1334 = vsub.f32 0.0, %v1302
        %v1335 = vsub.f32 0.0, %v1303
        %v1336 = vsub.f32 0.0, %v1304
        %v1337 = vsub.f32 0.0, %v1305
        %v1338 = vsub.f32 0.0, %v1306
        %v1339 = vsub.f32 0.0, %v1307
        %v1340 = vsub.f32 0.0, %v1308
        %v1341 = vsub.f32 0.0, %v1309
        %v1342 = vsub.f32 0.0, %v1310
        %v1343 = vsub.f32 0.0, %v1311
        %v1344 = vsub.f32 0.0, %v1312
        %v1345 = vsub.f32 0.0, %v1313
        %v1346 = vsub.f32 0.0, %v1314
        %v1347 = vsub.f32 0.0, %v1315
        %v1348 = vsub.f32 0.0, %v1316
        %v1349 = vsub.f32 0.0, %v1317
        %v1350 = vsub.f32 0.0, %v1318
        %v1351 = vsub.f32 0.0, %v1319
        %v1352 = vsub.f32 0.0, %v1320
        %v1353 = vsub.f32 0.0, %v1321
        %v1354 = vsub.f32 0.0, %v1322
        %v1355 = vsub.f32 0.0, %v1323
        %v1356 = vsub.f32 0.0, %v1324
        %v1357 = vsub.f32 0.0, %v1325
        %v1358 = vsub.f32 0.0, %v1326
        %v1359 = vmul.f32 %v1327, 1.442695
        %v1360 = vpow.pop %v1359
        %v1361 = vmul.f32 %v1328, 1.442695
        %v1362 = vpow.pop %v1361
        %v1363 = vmul.f32 %v1329, 1.442695
        %v1364 = vpow.pop %v1363
        %v1365 = vmul.f32 %v1330, 1.442695
        %v1366 = vpow.pop %v1365
        %v1367 = vmul.f32 %v1331, 1.442695
        %v1368 = vpow.pop %v1367
        %v1369 = vmul.f32 %v1332, 1.442695
        %v1370 = vpow.pop %v1369
        %v1371 = vmul.f32 %v1333, 1.442695
        %v1372 = vpow.pop %v1371
        %v1373 = vmul.f32 %v1334, 1.442695
        %v1374 = vpow.pop %v1373
        %v1375 = vmul.f32 %v1335, 1.442695
        %v1376 = vpow.pop %v1375
        %v1377 = vmul.f32 %v1336, 1.442695
        %v1378 = vpow.pop %v1377
        %v1379 = vmul.f32 %v1337, 1.442695
        %v1380 = vpow.pop %v1379
        %v1381 = vmul.f32 %v1338, 1.442695
        %v1382 = vpow.pop %v1381
        %v1383 = vmul.f32 %v1339, 1.442695
        %v1384 = vpow.pop %v1383
        %v1385 = vmul.f32 %v1340, 1.442695
        %v1386 = vpow.pop %v1385
        %v1387 = vmul.f32 %v1341, 1.442695
        %v1388 = vpow.pop %v1387
        %v1389 = vmul.f32 %v1342, 1.442695
        %v1390 = vpow.pop %v1389
        %v1391 = vmul.f32 %v1343, 1.442695
        %v1392 = vpow.pop %v1391
        %v1393 = vmul.f32 %v1344, 1.442695
        %v1394 = vpow.pop %v1393
        %v1395 = vmul.f32 %v1345, 1.442695
        %v1396 = vpow.pop %v1395
        %v1397 = vmul.f32 %v1346, 1.442695
        %v1398 = vpow.pop %v1397
        %v1399 = vmul.f32 %v1347, 1.442695
        %v1400 = vpow.pop %v1399
        %v1401 = vmul.f32 %v1348, 1.442695
        %v1402 = vpow.pop %v1401
        %v1403 = vmul.f32 %v1349, 1.442695
        %v1404 = vpow.pop %v1403
        %v1405 = vmul.f32 %v1350, 1.442695
        %v1406 = vpow.pop %v1405
        %v1407 = vmul.f32 %v1351, 1.442695
        %v1408 = vpow.pop %v1407
        %v1409 = vmul.f32 %v1352, 1.442695
        %v1410 = vpow.pop %v1409
        %v1411 = vmul.f32 %v1353, 1.442695
        %v1412 = vpow.pop %v1411
        %v1413 = vmul.f32 %v1354, 1.442695
        %v1414 = vpow.pop %v1413
        %v1415 = vmul.f32 %v1355, 1.442695
        %v1416 = vpow.pop %v1415
        %v1417 = vmul.f32 %v1356, 1.442695
        %v1418 = vpow.pop %v1417
        %v1419 = vmul.f32 %v1357, 1.442695
        %v1420 = vpow.pop %v1419
        %v1421 = vmul.f32 %v1358, 1.442695
        %v1422 = vpow.pop %v1421
        %v1423 = vadd.f32 %v1360, 1.0
        %v1424 = vadd.f32 %v1362, 1.0
        %v1425 = vadd.f32 %v1364, 1.0
        %v1426 = vadd.f32 %v1366, 1.0
        %v1427 = vadd.f32 %v1368, 1.0
        %v1428 = vadd.f32 %v1370, 1.0
        %v1429 = vadd.f32 %v1372, 1.0
        %v1430 = vadd.f32 %v1374, 1.0
        %v1431 = vadd.f32 %v1376, 1.0
        %v1432 = vadd.f32 %v1378, 1.0
        %v1433 = vadd.f32 %v1380, 1.0
        %v1434 = vadd.f32 %v1382, 1.0
        %v1435 = vadd.f32 %v1384, 1.0
        %v1436 = vadd.f32 %v1386, 1.0
        %v1437 = vadd.f32 %v1388, 1.0
        %v1438 = vadd.f32 %v1390, 1.0
        %v1439 = vadd.f32 %v1392, 1.0
        %v1440 = vadd.f32 %v1394, 1.0
        %v1441 = vadd.f32 %v1396, 1.0
        %v1442 = vadd.f32 %v1398, 1.0
        %v1443 = vadd.f32 %v1400, 1.0
        %v1444 = vadd.f32 %v1402, 1.0
        %v1445 = vadd.f32 %v1404, 1.0
        %v1446 = vadd.f32 %v1406, 1.0
        %v1447 = vadd.f32 %v1408, 1.0
        %v1448 = vadd.f32 %v1410, 1.0
        %v1449 = vadd.f32 %v1412, 1.0
        %v1450 = vadd.f32 %v1414, 1.0
        %v1451 = vadd.f32 %v1416, 1.0
        %v1452 = vadd.f32 %v1418, 1.0
        %v1453 = vadd.f32 %v1420, 1.0
        %v1454 = vadd.f32 %v1422, 1.0
        %v1455 = vrcp.pop %v1423
        %v1456 = vrcp.pop %v1424
        %v1457 = vrcp.pop %v1425
        %v1458 = vrcp.pop %v1426
        %v1459 = vrcp.pop %v1427
        %v1460 = vrcp.pop %v1428
        %v1461 = vrcp.pop %v1429
        %v1462 = vrcp.pop %v1430
        %v1463 = vrcp.pop %v1431
        %v1464 = vrcp.pop %v1432
        %v1465 = vrcp.pop %v1433
        %v1466 = vrcp.pop %v1434
        %v1467 = vrcp.pop %v1435
        %v1468 = vrcp.pop %v1436
        %v1469 = vrcp.pop %v1437
        %v1470 = vrcp.pop %v1438
        %v1471 = vrcp.pop %v1439
        %v1472 = vrcp.pop %v1440
        %v1473 = vrcp.pop %v1441
        %v1474 = vrcp.pop %v1442
        %v1475 = vrcp.pop %v1443
        %v1476 = vrcp.pop %v1444
        %v1477 = vrcp.pop %v1445
        %v1478 = vrcp.pop %v1446
        %v1479 = vrcp.pop %v1447
        %v1480 = vrcp.pop %v1448
        %v1481 = vrcp.pop %v1449
        %v1482 = vrcp.pop %v1450
        %v1483 = vrcp.pop %v1451
        %v1484 = vrcp.pop %v1452
        %v1485 = vrcp.pop %v1453
        %v1486 = vrcp.pop %v1454
        %vm1487 = vcmask 7168
        %1488 = vst.msk [vmem:[%s330] sm:$0xff] %vm1487, %v1455
        %1489 = vst.msk [vmem:[%s330 + $0x8] sm:$0xff] %vm1487, %v1456
        %1490 = vst.msk [vmem:[%s330 + $0x10] sm:$0xff] %vm1487, %v1457
        %1491 = vst.msk [vmem:[%s330 + $0x18] sm:$0xff] %vm1487, %v1458
        %1492 = vst.msk [vmem:[%s330 + $0x20] sm:$0xff] %vm1487, %v1459
        %1493 = vst.msk [vmem:[%s330 + $0x28] sm:$0xff] %vm1487, %v1460
        %1494 = vst.msk [vmem:[%s330 + $0x30] sm:$0xff] %vm1487, %v1461
        %1495 = vst.msk [vmem:[%s330 + $0x38] sm:$0xff] %vm1487, %v1462
        %1496 = vst.msk [vmem:[%s330 + $0x40] sm:$0xff] %vm1487, %v1463
        %1497 = vst.msk [vmem:[%s330 + $0x48] sm:$0xff] %vm1487, %v1464
        %1498 = vst.msk [vmem:[%s330 + $0x50] sm:$0xff] %vm1487, %v1465
        %1499 = vst.msk [vmem:[%s330 + $0x58] sm:$0xff] %vm1487, %v1466
        %1500 = vst.msk [vmem:[%s330 + $0x60] sm:$0xff] %vm1487, %v1467
        %1501 = vst.msk [vmem:[%s330 + $0x68] sm:$0xff] %vm1487, %v1468
        %1502 = vst.msk [vmem:[%s330 + $0x70] sm:$0xff] %vm1487, %v1469
        %1503 = vst.msk [vmem:[%s330 + $0x78] sm:$0xff] %vm1487, %v1470
        %1504 = vst.msk [vmem:[%s330 + $0x80] sm:$0xff] %vm1487, %v1471
        %1505 = vst.msk [vmem:[%s330 + $0x88] sm:$0xff] %vm1487, %v1472
        %1506 = vst.msk [vmem:[%s330 + $0x90] sm:$0xff] %vm1487, %v1473
        %1507 = vst.msk [vmem:[%s330 + $0x98] sm:$0xff] %vm1487, %v1474
        %1508 = vst.msk [vmem:[%s330 + $0xa0] sm:$0xff] %vm1487, %v1475
        %1509 = vst.msk [vmem:[%s330 + $0xa8] sm:$0xff] %vm1487, %v1476
        %1510 = vst.msk [vmem:[%s330 + $0xb0] sm:$0xff] %vm1487, %v1477
        %1511 = vst.msk [vmem:[%s330 + $0xb8] sm:$0xff] %vm1487, %v1478
        %1512 = vst.msk [vmem:[%s330 + $0xc0] sm:$0xff] %vm1487, %v1479
        %1513 = vst.msk [vmem:[%s330 + $0xc8] sm:$0xff] %vm1487, %v1480
        %1514 = vst.msk [vmem:[%s330 + $0xd0] sm:$0xff] %vm1487, %v1481
        %1515 = vst.msk [vmem:[%s330 + $0xd8] sm:$0xff] %vm1487, %v1482
        %1516 = vst.msk [vmem:[%s330 + $0xe0] sm:$0xff] %vm1487, %v1483
        %1517 = vst.msk [vmem:[%s330 + $0xe8] sm:$0xff] %vm1487, %v1484
        %1518 = vst.msk [vmem:[%s330 + $0xf0] sm:$0xff] %vm1487, %v1485
        %1519 = vst.msk [vmem:[%s330 + $0xf8] sm:$0xff] %vm1487, %v1486
        %s1520 = smul.u32 32, %s24
        %p1521 = scmp.lt.s32.totalorder %s1520, 63
        %s1522 = scalar_select %p1521, %s1520, 63
        %s1523 = smul.addr %s1522, 8
        %s1524 = scalar_lea.vmem %s7, %s1523
        // Predicated region
        $region61: #{tpu_custom_call.1} parent=47 // pred_check
          %p1525 = pneg %p194
        $region62: #{tpu_custom_call.1} parent=47 // pred_check_branch
          %1527 = sbr.rel (%p1525) target = $region64
        $region63: #{tpu_custom_call.1} parent=47 // pred_region
          %s1528 = smul.u32 32, %s24
        $region64: #{tpu_custom_call.1} parent=47 // pred_fallthru
          _
      $region48: #{tpu_custom_call.1} parent=5 // pred_fallthru
        _
      %p1529 = scmp.le.s32.totalorder 2, %s19
      // Predicated region
      $region65: #{tpu_custom_call.1} parent=5 // pred_check
        %p1530 = pneg %p1529
      $region66: #{tpu_custom_call.1} parent=5 // pred_check_branch
        %1532 = sbr.rel (%p1530) target = $region68
      $region67: #{tpu_custom_call.1} parent=5 // pred_region
        %s1533 = ssub.s32 %s19, 2
        // Predicated region
        $region69: #{tpu_custom_call.1} parent=67 // pred_check
          %p1534 = pneg %p200
        $region70: #{tpu_custom_call.1} parent=67 // pred_check_branch
          %1536 = sbr.rel (%p1534) target = $region72
        $region71: #{tpu_custom_call.1} parent=67 // pred_region
          %s1537 = smul.u32 32, %s25
          %p1538 = scmp.lt.s32.totalorder %s1537, 63
          %s1539 = scalar_select %p1538, %s1537, 63
          %s1540 = smul.addr %s1539, 8
          %s1541 = scalar_lea.vmem %s7, %s1540
        $region72: #{tpu_custom_call.1} parent=67 // pred_fallthru
          _
      $region68: #{tpu_custom_call.1} parent=5 // pred_fallthru
        _
    $region6: #{tpu_custom_call.1} parent=1 // loop_footer
      %s23 = sadd.s32 1, %s19
    $region7: #{tpu_custom_call.1} parent=1 // loop_footer_branch
      %18 = sbr.rel target = $region3
    $region8: #{tpu_custom_call.1} parent=1 // loop_exit
      _
    %1542 = vsyncpa [#allocation4], 1
    %s1543 = scalar_lea.sflag [#allocation4], 1
    %1544 = vsyncpa %s1543, 1
    %1545 = vsyncpa [#allocation6], 1

</llo_original>
